<compile_context>
chip_gen: v7x
topology: tpu7x:2x2x1
jax: 0.10.0
libtpu: 0.0.40
codegen_flags: <defaults>
</compile_context>

<pallas_src>
import functools

import jax
import jax.numpy as jnp
from jax.experimental import pallas as pl
from jax.experimental.pallas import tpu as pltpu


# ----------------------------------------------------------------------------
# Kernel
# ----------------------------------------------------------------------------
def _student_block_kernel(
    x_ref,
    wqkv_ref, wo_ref, w1_ref, w2_ref, wp_ref,      # bf16 matmul weights
    bqkv_ref, bm1_ref, vec_ref,                    # f32 packed bias/LN vectors
    out_ref, proj_ref,
    *, n_head, eps, is_causal,
):
    f32 = jnp.float32
    bf16 = jnp.bfloat16

    xb = x_ref[...].astype(f32)               # (Bblk, S, E)
    Bblk, S, E = xb.shape
    R = Bblk * S
    d_head = E // n_head
    scale = 1.0 / (d_head ** 0.5)

    # Flatten (Bblk, S) into one row dimension (S % 8 == 0 keeps this a
    # layout-preserving reshape) so token-wise matmuls see Bblk*S rows.
    x = xb.reshape(R, E)

    # Packed per-channel f32 vectors: rows = [bo, g1, be1, g2, be2, bm2, 0, 0]
    bo  = vec_ref[0:1, :]
    g1  = vec_ref[1:2, :]
    be1 = vec_ref[2:3, :]
    g2  = vec_ref[3:4, :]
    be2 = vec_ref[4:5, :]
    bm2 = vec_ref[5:6, :]

    # ---- fused QKV projection: one bf16 MXU matmul, f32 accumulation --------
    qkv = jnp.dot(x.astype(bf16), wqkv_ref[...],
                  preferred_element_type=f32) + bqkv_ref[...]
    q = qkv[:, 0 * E:1 * E] * scale            # fold 1/sqrt(d_head) into q once
    k = qkv[:, 1 * E:2 * E]
    v = qkv[:, 2 * E:3 * E]

    # ---- additive causal mask, built once (finite, not -inf) ----------------
    if is_causal:
        row = jax.lax.broadcasted_iota(jnp.int32, (S, S), 0)
        col = jax.lax.broadcasted_iota(jnp.int32, (S, S), 1)
        causal_add = jnp.where(col > row, jnp.float32(-1e30), jnp.float32(0.0))

    qk_dims = (((1,), (1,)), ((), ()))         # q @ k^T without explicit .T

    # ---- attention: per-(batch, head) static loops; head outputs are folded
    #      through their slice of Wo (no lane-axis concatenate) ---------------
    attn_parts = []
    for b in range(Bblk):
        r0 = b * S
        acc = jnp.zeros((S, E), f32)
        for h in range(n_head):
            c0 = h * d_head
            qh = q[r0:r0 + S, c0:c0 + d_head].astype(bf16)
            kh = k[r0:r0 + S, c0:c0 + d_head].astype(bf16)
            vh = v[r0:r0 + S, c0:c0 + d_head].astype(bf16)
            s = jax.lax.dot_general(qh, kh, qk_dims, preferred_element_type=f32)
            if is_causal:
                s = s + causal_add
            m = jnp.max(s, axis=-1, keepdims=True)
            p = jnp.exp(s - m)
            denom = jnp.sum(p, axis=-1, keepdims=True)
            p = p * pl.reciprocal(denom, approx=True)
            o = jnp.dot(p.astype(bf16), vh, preferred_element_type=f32)
            acc = acc + jnp.dot(o.astype(bf16), wo_ref[c0:c0 + d_head, :],
                                preferred_element_type=f32)
        attn_parts.append(acc)
    attn = jnp.concatenate(attn_parts, axis=0) if Bblk > 1 else attn_parts[0]
    attn = attn + bo
    # attn_pdrop dropout: identity in eval mode

    # ---- residual + ln_1 (f32 elementwise) -----------------------------------
    x1 = x + attn
    mu1 = jnp.mean(x1, axis=-1, keepdims=True)
    var1 = jnp.mean((x1 - mu1) ** 2, axis=-1, keepdims=True)
    x1n = (x1 - mu1) * jax.lax.rsqrt(var1 + eps) * g1 + be1

    # ---- MLP: Linear -> exact GELU (erf) -> Linear (resid dropout = identity)
    h1 = jnp.dot(x1n.astype(bf16), w1_ref[...],
                 preferred_element_type=f32) + bm1_ref[...]
    h1 = 0.5 * h1 * (1.0 + jax.lax.erf(h1 * 0.7071067811865476))
    ffn = jnp.dot(h1.astype(bf16), w2_ref[...],
                  preferred_element_type=f32) + bm2

    # ---- residual + ln_2 ------------------------------------------------------
    x2 = x1n + ffn
    mu2 = jnp.mean(x2, axis=-1, keepdims=True)
    var2 = jnp.mean((x2 - mu2) ** 2, axis=-1, keepdims=True)
    block_out = (x2 - mu2) * jax.lax.rsqrt(var2 + eps) * g2 + be2

    out_ref[...] = block_out.reshape(Bblk, S, E).astype(out_ref.dtype)

    # ---- bias-free distill projection -----------------------------------------
    T = proj_ref.shape[-1]
    proj = jnp.dot(block_out.astype(bf16), wp_ref[...],
                   preferred_element_type=f32)
    proj_ref[...] = proj.reshape(Bblk, S, T).astype(proj_ref.dtype)


# ----------------------------------------------------------------------------
# Wrapper
# ----------------------------------------------------------------------------
_WEIGHT_ORDER = ("wqkv_t", "wo_t", "w1_t", "w2_t", "wp_t", "bqkv", "bm1", "vecs")


def student_block_forward(x, params, *, n_head, eps=1e-5, is_causal=False,
                          batch_block=None):
    B, S, E = x.shape
    T = params["wp_t"].shape[1]

    # Pack several batch elements per grid step so matmuls see ~128 rows.
    if batch_block is None:
        batch_block = max(1, min(B, max(1, 128 // S)))
    while B % batch_block != 0:            # must evenly divide the batch
        batch_block -= 1
    Bblk = batch_block

    kernel = functools.partial(
        _student_block_kernel, n_head=n_head, eps=eps, is_causal=is_causal
    )

    weights = [params[name] for name in _WEIGHT_ORDER]   # all 2-D, full blocks
    weight_specs = [pl.BlockSpec(w.shape, lambda b: (0, 0)) for w in weights]

    grid_spec = pltpu.PrefetchScalarGridSpec(
        num_scalar_prefetch=0,
        grid=(B // Bblk,),
        in_specs=[pl.BlockSpec((Bblk, S, E), lambda b: (b, 0, 0))] + weight_specs,
        out_specs=[
            pl.BlockSpec((Bblk, S, E), lambda b: (b, 0, 0)),
            pl.BlockSpec((Bblk, S, T), lambda b: (b, 0, 0)),
        ],
    )

    return pl.pallas_call(
        kernel,
        out_shape=(
            jax.ShapeDtypeStruct((B, S, E), x.dtype),
            jax.ShapeDtypeStruct((B, S, T), x.dtype),
        ),
        grid_spec=grid_spec,
        compiler_params=pltpu.CompilerParams(
            dimension_semantics=("parallel",),
            vmem_limit_bytes=32 * 1024 * 1024,
        ),
    )(x, *weights)


# ----------------------------------------------------------------------------
# Deterministic parameter init (PyTorch layouts, converted to kernel layout)
# ----------------------------------------------------------------------------
def init_params(key, n_embd, n_inner, teacher_hidden):
    E, I, T = n_embd, n_inner, teacher_hidden
    ks = jax.random.split(key, 10)
    std = 0.02

    in_proj_w = jax.random.normal(ks[0], (3 * E, E), jnp.float32) * std  # torch [3E, E]
    in_proj_b = jax.random.normal(ks[1], (3 * E,), jnp.float32) * std
    out_proj_w = jax.random.normal(ks[2], (E, E), jnp.float32) * std     # torch [E, E]
    out_proj_b = jax.random.normal(ks[3], (E,), jnp.float32) * std
    w1 = jax.random.normal(ks[4], (I, E), jnp.float32) * std             # torch [I, E]
    b1 = jax.random.normal(ks[5], (I,), jnp.float32) * std
    w2 = jax.random.normal(ks[6], (E, I), jnp.float32) * std             # torch [E, I]
    b2 = jax.random.normal(ks[7], (E,), jnp.float32) * std
    wp = jax.random.normal(ks[8], (T, E), jnp.float32) * std             # torch [T, E]
    lnk = jax.random.split(ks[9], 4)
    g1 = 1.0 + 0.01 * jax.random.normal(lnk[0], (E,), jnp.float32)
    be1 = 0.01 * jax.random.normal(lnk[1], (E,), jnp.float32)
    g2 = 1.0 + 0.01 * jax.random.normal(lnk[2], (E,), jnp.float32)
    be2 = 0.01 * jax.random.normal(lnk[3], (E,), jnp.float32)

    bf = lambda a: a.astype(jnp.bfloat16)   # MXU operands stored as bf16

    # Pack the small per-channel vectors into one (8, E) f32 block.
    vecs = jnp.zeros((8, E), jnp.float32)
    vecs = vecs.at[0].set(out_proj_b).at[1].set(g1).at[2].set(be1)
    vecs = vecs.at[3].set(g2).at[4].set(be2).at[5].set(b2)

    return dict(
        wqkv_t=bf(in_proj_w.T),          # (E, 3E): output columns = q | k | v
        wo_t=bf(out_proj_w.T),           # (E, E)
        w1_t=bf(w1.T),                   # (E, I)
        w2_t=bf(w2.T),                   # (I, E)
        wp_t=bf(wp.T),                   # (E, T), bias-free distill projection
        bqkv=in_proj_b.reshape(1, 3 * E),
        bm1=b1.reshape(1, I),
        vecs=vecs,                       # rows: bo, g1, be1, g2, be2, bm2
    )


# ----------------------------------------------------------------------------
# Pure-JAX reference (mirrors the PyTorch forward) for a correctness check.
# Uses the same bf16-stored weights (cast to f32) so the only drift vs. the
# kernel is activation rounding / approx reciprocal.
# ----------------------------------------------------------------------------
def reference_forward(x, p, *, n_head, eps=1e-5, is_causal=False):
    B, S, E = x.shape
    d_head = E // n_head
    f32 = jnp.float32

    wqkv = p["wqkv_t"].astype(f32)
    wo = p["wo_t"].astype(f32)
    w1 = p["w1_t"].astype(f32)
    w2 = p["w2_t"].astype(f32)
    wp = p["wp_t"].astype(f32)
    bo, g1, be1, g2, be2, bm2 = (p["vecs"][i] for i in range(6))

    qkv = x @ wqkv + p["bqkv"][0]
    q, k, v = qkv[..., :E], qkv[..., E:2 * E], qkv[..., 2 * E:]
    split = lambda t: t.reshape(B, S, n_head, d_head).transpose(0, 2, 1, 3)
    qh, kh, vh = split(q), split(k), split(v)
    s = jnp.einsum("bhqd,bhkd->bhqk", qh, kh) / jnp.sqrt(jnp.float32(d_head))
    if is_causal:
        mask = jnp.triu(jnp.ones((S, S), bool), 1)
        s = jnp.where(mask, -jnp.inf, s)
    a = jax.nn.softmax(s, axis=-1)
    o = jnp.einsum("bhqk,bhkd->bhqd", a, vh).transpose(0, 2, 1, 3).reshape(B, S, E)
    attn = o @ wo + bo

    def ln(t, g, b):
        mu = jnp.mean(t, axis=-1, keepdims=True)
        var = jnp.mean((t - mu) ** 2, axis=-1, keepdims=True)
        return (t - mu) * jax.lax.rsqrt(var + eps) * g + b

    x1 = ln(x + attn, g1, be1)
    h = jax.nn.gelu(x1 @ w1 + p["bm1"][0], approximate=False)
    ffn = h @ w2 + bm2
    out = ln(x1 + ffn, g2, be2)
    proj = out @ wp
    return out, proj


# ----------------------------------------------------------------------------
if __name__ == "__main__":
    # small config consistent with the module: n_embd=32, n_head=2,
    # n_inner=64, teacher_hidden_size=64 (!= n_embd -> projection active)
    B, S, E, H, I, T = 2, 8, 32, 2, 64, 64
    EPS = 1e-5

    key = jax.random.PRNGKey(0)
    k_x, k_p = jax.random.split(key)
    x = jax.random.normal(k_x, (B, S, E), jnp.float32)
    params = init_params(k_p, E, I, T)

    out, proj = student_block_forward(x, params, n_head=H, eps=EPS, is_causal=True)
    out = jax.block_until_ready(out)
    proj = jax.block_until_ready(proj)

    ref_out, ref_proj = reference_forward(x, params, n_head=H, eps=EPS, is_causal=True)

    assert out.shape == (B, S, E) and proj.shape == (B, S, T)
    assert bool(jnp.all(jnp.isfinite(out))) and bool(jnp.all(jnp.isfinite(proj)))
    assert jnp.allclose(out, ref_out, atol=2e-2, rtol=2e-2), \
        float(jnp.max(jnp.abs(out - ref_out)))
    assert jnp.allclose(proj, ref_proj, atol=2e-2, rtol=2e-2), \
        float(jnp.max(jnp.abs(proj - ref_proj)))

    print("KERNEL_OK")
</pallas_src>

<mosaic_0001>
module attributes {stable_mosaic.version = 11 : i64} {
  func.func @_student_block_kernel(%arg0: i32, %arg1: memref<2x8x32xf32, #tpu.memory_space<vmem>>, %arg2: memref<32x96xbf16, #tpu.memory_space<vmem>>, %arg3: memref<32x32xbf16, #tpu.memory_space<vmem>>, %arg4: memref<32x64xbf16, #tpu.memory_space<vmem>>, %arg5: memref<64x32xbf16, #tpu.memory_space<vmem>>, %arg6: memref<32x64xbf16, #tpu.memory_space<vmem>>, %arg7: memref<1x96xf32, #tpu.memory_space<vmem>>, %arg8: memref<1x64xf32, #tpu.memory_space<vmem>>, %arg9: memref<8x32xf32, #tpu.memory_space<vmem>>, %arg10: memref<2x8x32xf32, #tpu.memory_space<vmem>>, %arg11: memref<2x8x64xf32, #tpu.memory_space<vmem>>) attributes {dimension_semantics = [#tpu.dimension_semantics<parallel>], iteration_bounds = array<i64: 1>, scalar_prefetch = 0 : i64, scratch_operands = 0 : i64, tpu.core_type = #tpu.core_type<tc>, window_params = [{transform_indices = @transform_0, window_bounds = array<i64: 2, 8, 32>}, {pipeline_mode = #tpu.pipeline_mode<synchronous>, transform_indices = @transform_1, window_bounds = array<i64: 32, 96>}, {pipeline_mode = #tpu.pipeline_mode<synchronous>, transform_indices = @transform_2, window_bounds = array<i64: 32, 32>}, {pipeline_mode = #tpu.pipeline_mode<synchronous>, transform_indices = @transform_3, window_bounds = array<i64: 32, 64>}, {pipeline_mode = #tpu.pipeline_mode<synchronous>, transform_indices = @transform_4, window_bounds = array<i64: 64, 32>}, {pipeline_mode = #tpu.pipeline_mode<synchronous>, transform_indices = @transform_5, window_bounds = array<i64: 32, 64>}, {pipeline_mode = #tpu.pipeline_mode<synchronous>, transform_indices = @transform_6, window_bounds = array<i64: 1, 96>}, {pipeline_mode = #tpu.pipeline_mode<synchronous>, transform_indices = @transform_7, window_bounds = array<i64: 1, 64>}, {pipeline_mode = #tpu.pipeline_mode<synchronous>, transform_indices = @transform_8, window_bounds = array<i64: 8, 32>}, {transform_indices = @transform_9, window_bounds = array<i64: 2, 8, 32>}, {transform_indices = @transform_10, window_bounds = array<i64: 2, 8, 64>}]} {
    %c0 = arith.constant 0 : index
    %c0_0 = arith.constant 0 : index
    %c0_1 = arith.constant 0 : index
    %0 = vector.load %arg1[%c0, %c0_0, %c0_1] : memref<2x8x32xf32, #tpu.memory_space<vmem>>, vector<2x8x32xf32>
    %1 = vector.shape_cast %0 : vector<2x8x32xf32> to vector<16x32xf32>
    %c0_2 = arith.constant 0 : index
    %c0_3 = arith.constant 0 : index
    %2 = vector.load %arg9[%c0_2, %c0_3] : memref<8x32xf32, #tpu.memory_space<vmem>>, vector<1x32xf32>
    %c1 = arith.constant 1 : index
    %c0_4 = arith.constant 0 : index
    %3 = vector.load %arg9[%c1, %c0_4] : memref<8x32xf32, #tpu.memory_space<vmem>>, vector<1x32xf32>
    %c2 = arith.constant 2 : index
    %c0_5 = arith.constant 0 : index
    %4 = vector.load %arg9[%c2, %c0_5] : memref<8x32xf32, #tpu.memory_space<vmem>>, vector<1x32xf32>
    %c3 = arith.constant 3 : index
    %c0_6 = arith.constant 0 : index
    %5 = vector.load %arg9[%c3, %c0_6] : memref<8x32xf32, #tpu.memory_space<vmem>>, vector<1x32xf32>
    %c4 = arith.constant 4 : index
    %c0_7 = arith.constant 0 : index
    %6 = vector.load %arg9[%c4, %c0_7] : memref<8x32xf32, #tpu.memory_space<vmem>>, vector<1x32xf32>
    %c5 = arith.constant 5 : index
    %c0_8 = arith.constant 0 : index
    %7 = vector.load %arg9[%c5, %c0_8] : memref<8x32xf32, #tpu.memory_space<vmem>>, vector<1x32xf32>
    %8 = arith.truncf %1 : vector<16x32xf32> to vector<16x32xbf16>
    %c0_9 = arith.constant 0 : index
    %c0_10 = arith.constant 0 : index
    %9 = vector.load %arg2[%c0_9, %c0_10] : memref<32x96xbf16, #tpu.memory_space<vmem>>, vector<32x96xbf16>
    %cst = arith.constant dense<0.000000e+00> : vector<16x96xf32>
    %10 = tpu.matmul %8, %9, %cst {dimension_numbers = #tpu.dot_dimension_numbers<[1], [0], [0], [1], [0, 0, 1, 1], [], []>} : vector<16x32xbf16>, vector<32x96xbf16>, vector<16x96xf32> -> vector<16x96xf32>
    %c0_11 = arith.constant 0 : index
    %c0_12 = arith.constant 0 : index
    %11 = vector.load %arg7[%c0_11, %c0_12] : memref<1x96xf32, #tpu.memory_space<vmem>>, vector<1x96xf32>
    %12 = vector.broadcast %11 : vector<1x96xf32> to vector<16x96xf32>
    %13 = arith.addf %10, %12 : vector<16x96xf32>
    %14 = vector.extract_strided_slice %13 {offsets = [0, 0], sizes = [16, 32], strides = [1, 1]} : vector<16x96xf32> to vector<16x32xf32>
    %cst_13 = arith.constant 2.500000e-01 : f32
    %15 = vector.broadcast %cst_13 : f32 to vector<16x32xf32>
    %16 = arith.mulf %14, %15 : vector<16x32xf32>
    %17 = vector.extract_strided_slice %13 {offsets = [0, 32], sizes = [16, 32], strides = [1, 1]} : vector<16x96xf32> to vector<16x32xf32>
    %18 = vector.extract_strided_slice %13 {offsets = [0, 64], sizes = [16, 32], strides = [1, 1]} : vector<16x96xf32> to vector<16x32xf32>
    %19 = tpu.iota {dimensions = array<i32: 0>} : vector<8x8xi32>
    %20 = tpu.iota {dimensions = array<i32: 1>} : vector<8x8xi32>
    %21 = arith.cmpi sgt, %20, %19 : vector<8x8xi32>
    %cst_14 = arith.constant -1.000000e+30 : f32
    %cst_15 = arith.constant 0.000000e+00 : f32
    %22 = vector.broadcast %cst_14 : f32 to vector<8x8xf32>
    %23 = vector.broadcast %cst_15 : f32 to vector<8x8xf32>
    %24 = arith.select %21, %22, %23 : vector<8x8xi1>, vector<8x8xf32>
    %cst_16 = arith.constant 0.000000e+00 : f32
    %25 = vector.broadcast %cst_16 : f32 to vector<8x32xf32>
    %26 = vector.extract_strided_slice %16 {offsets = [0, 0], sizes = [8, 16], strides = [1, 1]} : vector<16x32xf32> to vector<8x16xf32>
    %27 = arith.truncf %26 : vector<8x16xf32> to vector<8x16xbf16>
    %28 = vector.extract_strided_slice %17 {offsets = [0, 0], sizes = [8, 16], strides = [1, 1]} : vector<16x32xf32> to vector<8x16xf32>
    %29 = arith.truncf %28 : vector<8x16xf32> to vector<8x16xbf16>
    %30 = vector.extract_strided_slice %18 {offsets = [0, 0], sizes = [8, 16], strides = [1, 1]} : vector<16x32xf32> to vector<8x16xf32>
    %31 = arith.truncf %30 : vector<8x16xf32> to vector<8x16xbf16>
    %cst_17 = arith.constant dense<0.000000e+00> : vector<8x8xf32>
    %32 = tpu.matmul %27, %29, %cst_17 {dimension_numbers = #tpu.dot_dimension_numbers<[1], [1], [0], [0], [0, 0, 1, 0], [], []>} : vector<8x16xbf16>, vector<8x16xbf16>, vector<8x8xf32> -> vector<8x8xf32>
    %33 = arith.addf %32, %24 : vector<8x8xf32>
    %cst_18 = arith.constant dense<0xFF800000> : vector<8xf32>
    %34 = vector.multi_reduction <maximumf>, %33, %cst_18 [1] : vector<8x8xf32> to vector<8xf32>
    %35 = vector.shape_cast %34 : vector<8xf32> to vector<8x1xf32>
    %36 = vector.broadcast %35 : vector<8x1xf32> to vector<8x8xf32>
    %37 = arith.subf %33, %36 : vector<8x8xf32>
    %38 = math.exp %37 : vector<8x8xf32>
    %cst_19 = arith.constant dense<0.000000e+00> : vector<8xf32>
    %39 = vector.multi_reduction <add>, %38, %cst_19 [1] : vector<8x8xf32> to vector<8xf32>
    %40 = vector.shape_cast %39 : vector<8xf32> to vector<8x1xf32>
    %41 = tpu.reciprocal %40 {approx = true} : vector<8x1xf32> -> vector<8x1xf32>
    %42 = vector.broadcast %41 : vector<8x1xf32> to vector<8x8xf32>
    %43 = arith.mulf %38, %42 : vector<8x8xf32>
    %44 = arith.truncf %43 : vector<8x8xf32> to vector<8x8xbf16>
    %cst_20 = arith.constant dense<0.000000e+00> : vector<8x16xf32>
    %45 = tpu.matmul %44, %31, %cst_20 {dimension_numbers = #tpu.dot_dimension_numbers<[1], [0], [0], [1], [0, 0, 1, 1], [], []>} : vector<8x8xbf16>, vector<8x16xbf16>, vector<8x16xf32> -> vector<8x16xf32>
    %46 = arith.truncf %45 : vector<8x16xf32> to vector<8x16xbf16>
    %c0_21 = arith.constant 0 : index
    %c0_22 = arith.constant 0 : index
    %47 = vector.load %arg3[%c0_21, %c0_22] : memref<32x32xbf16, #tpu.memory_space<vmem>>, vector<16x32xbf16>
    %cst_23 = arith.constant dense<0.000000e+00> : vector<8x32xf32>
    %48 = tpu.matmul %46, %47, %cst_23 {dimension_numbers = #tpu.dot_dimension_numbers<[1], [0], [0], [1], [0, 0, 1, 1], [], []>} : vector<8x16xbf16>, vector<16x32xbf16>, vector<8x32xf32> -> vector<8x32xf32>
    %49 = arith.addf %25, %48 : vector<8x32xf32>
    %50 = vector.extract_strided_slice %16 {offsets = [0, 16], sizes = [8, 16], strides = [1, 1]} : vector<16x32xf32> to vector<8x16xf32>
    %51 = arith.truncf %50 : vector<8x16xf32> to vector<8x16xbf16>
    %52 = vector.extract_strided_slice %17 {offsets = [0, 16], sizes = [8, 16], strides = [1, 1]} : vector<16x32xf32> to vector<8x16xf32>
    %53 = arith.truncf %52 : vector<8x16xf32> to vector<8x16xbf16>
    %54 = vector.extract_strided_slice %18 {offsets = [0, 16], sizes = [8, 16], strides = [1, 1]} : vector<16x32xf32> to vector<8x16xf32>
    %55 = arith.truncf %54 : vector<8x16xf32> to vector<8x16xbf16>
    %cst_24 = arith.constant dense<0.000000e+00> : vector<8x8xf32>
    %56 = tpu.matmul %51, %53, %cst_24 {dimension_numbers = #tpu.dot_dimension_numbers<[1], [1], [0], [0], [0, 0, 1, 0], [], []>} : vector<8x16xbf16>, vector<8x16xbf16>, vector<8x8xf32> -> vector<8x8xf32>
    %57 = arith.addf %56, %24 : vector<8x8xf32>
    %cst_25 = arith.constant dense<0xFF800000> : vector<8xf32>
    %58 = vector.multi_reduction <maximumf>, %57, %cst_25 [1] : vector<8x8xf32> to vector<8xf32>
    %59 = vector.shape_cast %58 : vector<8xf32> to vector<8x1xf32>
    %60 = vector.broadcast %59 : vector<8x1xf32> to vector<8x8xf32>
    %61 = arith.subf %57, %60 : vector<8x8xf32>
    %62 = math.exp %61 : vector<8x8xf32>
    %cst_26 = arith.constant dense<0.000000e+00> : vector<8xf32>
    %63 = vector.multi_reduction <add>, %62, %cst_26 [1] : vector<8x8xf32> to vector<8xf32>
    %64 = vector.shape_cast %63 : vector<8xf32> to vector<8x1xf32>
    %65 = tpu.reciprocal %64 {approx = true} : vector<8x1xf32> -> vector<8x1xf32>
    %66 = vector.broadcast %65 : vector<8x1xf32> to vector<8x8xf32>
    %67 = arith.mulf %62, %66 : vector<8x8xf32>
    %68 = arith.truncf %67 : vector<8x8xf32> to vector<8x8xbf16>
    %cst_27 = arith.constant dense<0.000000e+00> : vector<8x16xf32>
    %69 = tpu.matmul %68, %55, %cst_27 {dimension_numbers = #tpu.dot_dimension_numbers<[1], [0], [0], [1], [0, 0, 1, 1], [], []>} : vector<8x8xbf16>, vector<8x16xbf16>, vector<8x16xf32> -> vector<8x16xf32>
    %70 = arith.truncf %69 : vector<8x16xf32> to vector<8x16xbf16>
    %c16 = arith.constant 16 : index
    %c0_28 = arith.constant 0 : index
    %71 = vector.load %arg3[%c16, %c0_28] : memref<32x32xbf16, #tpu.memory_space<vmem>>, vector<16x32xbf16>
    %cst_29 = arith.constant dense<0.000000e+00> : vector<8x32xf32>
    %72 = tpu.matmul %70, %71, %cst_29 {dimension_numbers = #tpu.dot_dimension_numbers<[1], [0], [0], [1], [0, 0, 1, 1], [], []>} : vector<8x16xbf16>, vector<16x32xbf16>, vector<8x32xf32> -> vector<8x32xf32>
    %73 = arith.addf %49, %72 : vector<8x32xf32>
    %cst_30 = arith.constant 0.000000e+00 : f32
    %74 = vector.broadcast %cst_30 : f32 to vector<8x32xf32>
    %75 = vector.extract_strided_slice %16 {offsets = [8, 0], sizes = [8, 16], strides = [1, 1]} : vector<16x32xf32> to vector<8x16xf32>
    %76 = arith.truncf %75 : vector<8x16xf32> to vector<8x16xbf16>
    %77 = vector.extract_strided_slice %17 {offsets = [8, 0], sizes = [8, 16], strides = [1, 1]} : vector<16x32xf32> to vector<8x16xf32>
    %78 = arith.truncf %77 : vector<8x16xf32> to vector<8x16xbf16>
    %79 = vector.extract_strided_slice %18 {offsets = [8, 0], sizes = [8, 16], strides = [1, 1]} : vector<16x32xf32> to vector<8x16xf32>
    %80 = arith.truncf %79 : vector<8x16xf32> to vector<8x16xbf16>
    %cst_31 = arith.constant dense<0.000000e+00> : vector<8x8xf32>
    %81 = tpu.matmul %76, %78, %cst_31 {dimension_numbers = #tpu.dot_dimension_numbers<[1], [1], [0], [0], [0, 0, 1, 0], [], []>} : vector<8x16xbf16>, vector<8x16xbf16>, vector<8x8xf32> -> vector<8x8xf32>
    %82 = arith.addf %81, %24 : vector<8x8xf32>
    %cst_32 = arith.constant dense<0xFF800000> : vector<8xf32>
    %83 = vector.multi_reduction <maximumf>, %82, %cst_32 [1] : vector<8x8xf32> to vector<8xf32>
    %84 = vector.shape_cast %83 : vector<8xf32> to vector<8x1xf32>
    %85 = vector.broadcast %84 : vector<8x1xf32> to vector<8x8xf32>
    %86 = arith.subf %82, %85 : vector<8x8xf32>
    %87 = math.exp %86 : vector<8x8xf32>
    %cst_33 = arith.constant dense<0.000000e+00> : vector<8xf32>
    %88 = vector.multi_reduction <add>, %87, %cst_33 [1] : vector<8x8xf32> to vector<8xf32>
    %89 = vector.shape_cast %88 : vector<8xf32> to vector<8x1xf32>
    %90 = tpu.reciprocal %89 {approx = true} : vector<8x1xf32> -> vector<8x1xf32>
    %91 = vector.broadcast %90 : vector<8x1xf32> to vector<8x8xf32>
    %92 = arith.mulf %87, %91 : vector<8x8xf32>
    %93 = arith.truncf %92 : vector<8x8xf32> to vector<8x8xbf16>
    %cst_34 = arith.constant dense<0.000000e+00> : vector<8x16xf32>
    %94 = tpu.matmul %93, %80, %cst_34 {dimension_numbers = #tpu.dot_dimension_numbers<[1], [0], [0], [1], [0, 0, 1, 1], [], []>} : vector<8x8xbf16>, vector<8x16xbf16>, vector<8x16xf32> -> vector<8x16xf32>
    %95 = arith.truncf %94 : vector<8x16xf32> to vector<8x16xbf16>
    %c0_35 = arith.constant 0 : index
    %c0_36 = arith.constant 0 : index
    %96 = vector.load %arg3[%c0_35, %c0_36] : memref<32x32xbf16, #tpu.memory_space<vmem>>, vector<16x32xbf16>
    %cst_37 = arith.constant dense<0.000000e+00> : vector<8x32xf32>
    %97 = tpu.matmul %95, %96, %cst_37 {dimension_numbers = #tpu.dot_dimension_numbers<[1], [0], [0], [1], [0, 0, 1, 1], [], []>} : vector<8x16xbf16>, vector<16x32xbf16>, vector<8x32xf32> -> vector<8x32xf32>
    %98 = arith.addf %74, %97 : vector<8x32xf32>
    %99 = vector.extract_strided_slice %16 {offsets = [8, 16], sizes = [8, 16], strides = [1, 1]} : vector<16x32xf32> to vector<8x16xf32>
    %100 = arith.truncf %99 : vector<8x16xf32> to vector<8x16xbf16>
    %101 = vector.extract_strided_slice %17 {offsets = [8, 16], sizes = [8, 16], strides = [1, 1]} : vector<16x32xf32> to vector<8x16xf32>
    %102 = arith.truncf %101 : vector<8x16xf32> to vector<8x16xbf16>
    %103 = vector.extract_strided_slice %18 {offsets = [8, 16], sizes = [8, 16], strides = [1, 1]} : vector<16x32xf32> to vector<8x16xf32>
    %104 = arith.truncf %103 : vector<8x16xf32> to vector<8x16xbf16>
    %cst_38 = arith.constant dense<0.000000e+00> : vector<8x8xf32>
    %105 = tpu.matmul %100, %102, %cst_38 {dimension_numbers = #tpu.dot_dimension_numbers<[1], [1], [0], [0], [0, 0, 1, 0], [], []>} : vector<8x16xbf16>, vector<8x16xbf16>, vector<8x8xf32> -> vector<8x8xf32>
    %106 = arith.addf %105, %24 : vector<8x8xf32>
    %cst_39 = arith.constant dense<0xFF800000> : vector<8xf32>
    %107 = vector.multi_reduction <maximumf>, %106, %cst_39 [1] : vector<8x8xf32> to vector<8xf32>
    %108 = vector.shape_cast %107 : vector<8xf32> to vector<8x1xf32>
    %109 = vector.broadcast %108 : vector<8x1xf32> to vector<8x8xf32>
    %110 = arith.subf %106, %109 : vector<8x8xf32>
    %111 = math.exp %110 : vector<8x8xf32>
    %cst_40 = arith.constant dense<0.000000e+00> : vector<8xf32>
    %112 = vector.multi_reduction <add>, %111, %cst_40 [1] : vector<8x8xf32> to vector<8xf32>
    %113 = vector.shape_cast %112 : vector<8xf32> to vector<8x1xf32>
    %114 = tpu.reciprocal %113 {approx = true} : vector<8x1xf32> -> vector<8x1xf32>
    %115 = vector.broadcast %114 : vector<8x1xf32> to vector<8x8xf32>
    %116 = arith.mulf %111, %115 : vector<8x8xf32>
    %117 = arith.truncf %116 : vector<8x8xf32> to vector<8x8xbf16>
    %cst_41 = arith.constant dense<0.000000e+00> : vector<8x16xf32>
    %118 = tpu.matmul %117, %104, %cst_41 {dimension_numbers = #tpu.dot_dimension_numbers<[1], [0], [0], [1], [0, 0, 1, 1], [], []>} : vector<8x8xbf16>, vector<8x16xbf16>, vector<8x16xf32> -> vector<8x16xf32>
    %119 = arith.truncf %118 : vector<8x16xf32> to vector<8x16xbf16>
    %c16_42 = arith.constant 16 : index
    %c0_43 = arith.constant 0 : index
    %120 = vector.load %arg3[%c16_42, %c0_43] : memref<32x32xbf16, #tpu.memory_space<vmem>>, vector<16x32xbf16>
    %cst_44 = arith.constant dense<0.000000e+00> : vector<8x32xf32>
    %121 = tpu.matmul %119, %120, %cst_44 {dimension_numbers = #tpu.dot_dimension_numbers<[1], [0], [0], [1], [0, 0, 1, 1], [], []>} : vector<8x16xbf16>, vector<16x32xbf16>, vector<8x32xf32> -> vector<8x32xf32>
    %122 = arith.addf %98, %121 : vector<8x32xf32>
    %123 = tpu.concatenate %73, %122 in 0 : vector<8x32xf32>, vector<8x32xf32> -> vector<16x32xf32>
    %124 = vector.broadcast %2 : vector<1x32xf32> to vector<16x32xf32>
    %125 = arith.addf %123, %124 : vector<16x32xf32>
    %126 = arith.addf %1, %125 : vector<16x32xf32>
    %cst_45 = arith.constant dense<0.000000e+00> : vector<16xf32>
    %127 = vector.multi_reduction <add>, %126, %cst_45 [1] : vector<16x32xf32> to vector<16xf32>
    %128 = vector.shape_cast %127 : vector<16xf32> to vector<16x1xf32>
    %cst_46 = arith.constant 3.200000e+01 : f32
    %129 = vector.broadcast %cst_46 : f32 to vector<16x1xf32>
    %130 = arith.divf %128, %129 : vector<16x1xf32>
    %131 = vector.broadcast %130 : vector<16x1xf32> to vector<16x32xf32>
    %132 = arith.subf %126, %131 : vector<16x32xf32>
    %133 = arith.mulf %132, %132 : vector<16x32xf32>
    %cst_47 = arith.constant dense<0.000000e+00> : vector<16xf32>
    %134 = vector.multi_reduction <add>, %133, %cst_47 [1] : vector<16x32xf32> to vector<16xf32>
    %135 = vector.shape_cast %134 : vector<16xf32> to vector<16x1xf32>
    %cst_48 = arith.constant 3.200000e+01 : f32
    %136 = vector.broadcast %cst_48 : f32 to vector<16x1xf32>
    %137 = arith.divf %135, %136 : vector<16x1xf32>
    %138 = vector.broadcast %130 : vector<16x1xf32> to vector<16x32xf32>
    %139 = arith.subf %126, %138 : vector<16x32xf32>
    %cst_49 = arith.constant 9.99999974E-6 : f32
    %140 = vector.broadcast %cst_49 : f32 to vector<16x1xf32>
    %141 = arith.addf %137, %140 : vector<16x1xf32>
    %142 = math.rsqrt %141 : vector<16x1xf32>
    %143 = vector.broadcast %142 : vector<16x1xf32> to vector<16x32xf32>
    %144 = arith.mulf %139, %143 : vector<16x32xf32>
    %145 = vector.broadcast %3 : vector<1x32xf32> to vector<16x32xf32>
    %146 = arith.mulf %144, %145 : vector<16x32xf32>
    %147 = vector.broadcast %4 : vector<1x32xf32> to vector<16x32xf32>
    %148 = arith.addf %146, %147 : vector<16x32xf32>
    %149 = arith.truncf %148 : vector<16x32xf32> to vector<16x32xbf16>
    %c0_50 = arith.constant 0 : index
    %c0_51 = arith.constant 0 : index
    %150 = vector.load %arg4[%c0_50, %c0_51] : memref<32x64xbf16, #tpu.memory_space<vmem>>, vector<32x64xbf16>
    %cst_52 = arith.constant dense<0.000000e+00> : vector<16x64xf32>
    %151 = tpu.matmul %149, %150, %cst_52 {dimension_numbers = #tpu.dot_dimension_numbers<[1], [0], [0], [1], [0, 0, 1, 1], [], []>} : vector<16x32xbf16>, vector<32x64xbf16>, vector<16x64xf32> -> vector<16x64xf32>
    %c0_53 = arith.constant 0 : index
    %c0_54 = arith.constant 0 : index
    %152 = vector.load %arg8[%c0_53, %c0_54] : memref<1x64xf32, #tpu.memory_space<vmem>>, vector<1x64xf32>
    %153 = vector.broadcast %152 : vector<1x64xf32> to vector<16x64xf32>
    %154 = arith.addf %151, %153 : vector<16x64xf32>
    %cst_55 = arith.constant 5.000000e-01 : f32
    %155 = vector.broadcast %cst_55 : f32 to vector<16x64xf32>
    %156 = arith.mulf %155, %154 : vector<16x64xf32>
    %cst_56 = arith.constant 0.707106769 : f32
    %157 = vector.broadcast %cst_56 : f32 to vector<16x64xf32>
    %158 = arith.mulf %154, %157 : vector<16x64xf32>
    %159 = math.erf %158 : vector<16x64xf32>
    %cst_57 = arith.constant 1.000000e+00 : f32
    %160 = vector.broadcast %cst_57 : f32 to vector<16x64xf32>
    %161 = arith.addf %160, %159 : vector<16x64xf32>
    %162 = arith.mulf %156, %161 : vector<16x64xf32>
    %163 = arith.truncf %162 : vector<16x64xf32> to vector<16x64xbf16>
    %c0_58 = arith.constant 0 : index
    %c0_59 = arith.constant 0 : index
    %164 = vector.load %arg5[%c0_58, %c0_59] : memref<64x32xbf16, #tpu.memory_space<vmem>>, vector<64x32xbf16>
    %cst_60 = arith.constant dense<0.000000e+00> : vector<16x32xf32>
    %165 = tpu.matmul %163, %164, %cst_60 {dimension_numbers = #tpu.dot_dimension_numbers<[1], [0], [0], [1], [0, 0, 1, 1], [], []>} : vector<16x64xbf16>, vector<64x32xbf16>, vector<16x32xf32> -> vector<16x32xf32>
    %166 = vector.broadcast %7 : vector<1x32xf32> to vector<16x32xf32>
    %167 = arith.addf %165, %166 : vector<16x32xf32>
    %168 = arith.addf %148, %167 : vector<16x32xf32>
    %cst_61 = arith.constant dense<0.000000e+00> : vector<16xf32>
    %169 = vector.multi_reduction <add>, %168, %cst_61 [1] : vector<16x32xf32> to vector<16xf32>
    %170 = vector.shape_cast %169 : vector<16xf32> to vector<16x1xf32>
    %cst_62 = arith.constant 3.200000e+01 : f32
    %171 = vector.broadcast %cst_62 : f32 to vector<16x1xf32>
    %172 = arith.divf %170, %171 : vector<16x1xf32>
    %173 = vector.broadcast %172 : vector<16x1xf32> to vector<16x32xf32>
    %174 = arith.subf %168, %173 : vector<16x32xf32>
    %175 = arith.mulf %174, %174 : vector<16x32xf32>
    %cst_63 = arith.constant dense<0.000000e+00> : vector<16xf32>
    %176 = vector.multi_reduction <add>, %175, %cst_63 [1] : vector<16x32xf32> to vector<16xf32>
    %177 = vector.shape_cast %176 : vector<16xf32> to vector<16x1xf32>
    %cst_64 = arith.constant 3.200000e+01 : f32
    %178 = vector.broadcast %cst_64 : f32 to vector<16x1xf32>
    %179 = arith.divf %177, %178 : vector<16x1xf32>
    %180 = vector.broadcast %172 : vector<16x1xf32> to vector<16x32xf32>
    %181 = arith.subf %168, %180 : vector<16x32xf32>
    %cst_65 = arith.constant 9.99999974E-6 : f32
    %182 = vector.broadcast %cst_65 : f32 to vector<16x1xf32>
    %183 = arith.addf %179, %182 : vector<16x1xf32>
    %184 = math.rsqrt %183 : vector<16x1xf32>
    %185 = vector.broadcast %184 : vector<16x1xf32> to vector<16x32xf32>
    %186 = arith.mulf %181, %185 : vector<16x32xf32>
    %187 = vector.broadcast %5 : vector<1x32xf32> to vector<16x32xf32>
    %188 = arith.mulf %186, %187 : vector<16x32xf32>
    %189 = vector.broadcast %6 : vector<1x32xf32> to vector<16x32xf32>
    %190 = arith.addf %188, %189 : vector<16x32xf32>
    %191 = vector.shape_cast %190 : vector<16x32xf32> to vector<2x8x32xf32>
    %c0_66 = arith.constant 0 : index
    %c0_67 = arith.constant 0 : index
    %c0_68 = arith.constant 0 : index
    %192 = vector.load %arg10[%c0_66, %c0_67, %c0_68] : memref<2x8x32xf32, #tpu.memory_space<vmem>>, vector<2x8x32xf32>
    tpu.vector_store %arg10[%c0_66, %c0_67, %c0_68], %191 {strides = array<i32>} : memref<2x8x32xf32, #tpu.memory_space<vmem>>, vector<2x8x32xf32>,
    %193 = arith.truncf %190 : vector<16x32xf32> to vector<16x32xbf16>
    %c0_69 = arith.constant 0 : index
    %c0_70 = arith.constant 0 : index
    %194 = vector.load %arg6[%c0_69, %c0_70] : memref<32x64xbf16, #tpu.memory_space<vmem>>, vector<32x64xbf16>
    %cst_71 = arith.constant dense<0.000000e+00> : vector<16x64xf32>
    %195 = tpu.matmul %193, %194, %cst_71 {dimension_numbers = #tpu.dot_dimension_numbers<[1], [0], [0], [1], [0, 0, 1, 1], [], []>} : vector<16x32xbf16>, vector<32x64xbf16>, vector<16x64xf32> -> vector<16x64xf32>
    %196 = vector.shape_cast %195 : vector<16x64xf32> to vector<2x8x64xf32>
    %c0_72 = arith.constant 0 : index
    %c0_73 = arith.constant 0 : index
    %c0_74 = arith.constant 0 : index
    %197 = vector.load %arg11[%c0_72, %c0_73, %c0_74] : memref<2x8x64xf32, #tpu.memory_space<vmem>>, vector<2x8x64xf32>
    tpu.vector_store %arg11[%c0_72, %c0_73, %c0_74], %196 {strides = array<i32>} : memref<2x8x64xf32, #tpu.memory_space<vmem>>, vector<2x8x64xf32>,
    return
  }
  func.func @transform_0(%arg0: i32) -> (i32, i32, i32) {
    %c0_i32 = arith.constant 0 : i32
    %c0_i32_0 = arith.constant 0 : i32
    %c0_i32_1 = arith.constant 0 : i32
    return %arg0, %c0_i32, %c0_i32_0 : i32, i32, i32
  }
  func.func @transform_1(%arg0: i32) -> (i32, i32) {
    %c0_i32 = arith.constant 0 : i32
    %c0_i32_0 = arith.constant 0 : i32
    %c0_i32_1 = arith.constant 0 : i32
    return %c0_i32, %c0_i32_0 : i32, i32
  }
  func.func @transform_2(%arg0: i32) -> (i32, i32) {
    %c0_i32 = arith.constant 0 : i32
    %c0_i32_0 = arith.constant 0 : i32
    %c0_i32_1 = arith.constant 0 : i32
    return %c0_i32, %c0_i32_0 : i32, i32
  }
  func.func @transform_3(%arg0: i32) -> (i32, i32) {
    %c0_i32 = arith.constant 0 : i32
    %c0_i32_0 = arith.constant 0 : i32
    %c0_i32_1 = arith.constant 0 : i32
    return %c0_i32, %c0_i32_0 : i32, i32
  }
  func.func @transform_4(%arg0: i32) -> (i32, i32) {
    %c0_i32 = arith.constant 0 : i32
    %c0_i32_0 = arith.constant 0 : i32
    %c0_i32_1 = arith.constant 0 : i32
    return %c0_i32, %c0_i32_0 : i32, i32
  }
  func.func @transform_5(%arg0: i32) -> (i32, i32) {
    %c0_i32 = arith.constant 0 : i32
    %c0_i32_0 = arith.constant 0 : i32
    %c0_i32_1 = arith.constant 0 : i32
    return %c0_i32, %c0_i32_0 : i32, i32
  }
  func.func @transform_6(%arg0: i32) -> (i32, i32) {
    %c0_i32 = arith.constant 0 : i32
    %c0_i32_0 = arith.constant 0 : i32
    %c0_i32_1 = arith.constant 0 : i32
    return %c0_i32, %c0_i32_0 : i32, i32
  }
  func.func @transform_7(%arg0: i32) -> (i32, i32) {
    %c0_i32 = arith.constant 0 : i32
    %c0_i32_0 = arith.constant 0 : i32
    %c0_i32_1 = arith.constant 0 : i32
    return %c0_i32, %c0_i32_0 : i32, i32
  }
  func.func @transform_8(%arg0: i32) -> (i32, i32) {
    %c0_i32 = arith.constant 0 : i32
    %c0_i32_0 = arith.constant 0 : i32
    %c0_i32_1 = arith.constant 0 : i32
    return %c0_i32, %c0_i32_0 : i32, i32
  }
  func.func @transform_9(%arg0: i32) -> (i32, i32, i32) {
    %c0_i32 = arith.constant 0 : i32
    %c0_i32_0 = arith.constant 0 : i32
    %c0_i32_1 = arith.constant 0 : i32
    return %arg0, %c0_i32, %c0_i32_0 : i32, i32, i32
  }
  func.func @transform_10(%arg0: i32) -> (i32, i32, i32) {
    %c0_i32 = arith.constant 0 : i32
    %c0_i32_0 = arith.constant 0 : i32
    %c0_i32_1 = arith.constant 0 : i32
    return %arg0, %c0_i32, %c0_i32_0 : i32, i32, i32
  }
}

</mosaic_0001>

<llo_original>
// kernel: tpu_custom_call.1
$region0: #{tpu_custom_call.1}
  #allocation0 [shape = 'u32[]', space=smem, size = 0x4, offset = 0x4, fixed_abs, tag = 'smem constant byte address 0x4 - core index']
  #allocation1 [shape = 'u32[144,128]{1,0:T(1,128)}', space=vmem, size = 0x12000, scoped, tag = 'internal scratch']
  %s0 = inlined_call_operand.vmem [shape: f32[2,8,32], index: 0, kind: input, shape index: {}]
  %s1 = inlined_call_operand.vmem [shape: bf16[32,96], index: 1, kind: input, shape index: {}]
  %s2 = inlined_call_operand.vmem [shape: bf16[32,32], index: 2, kind: input, shape index: {}]
  %s3 = inlined_call_operand.hbm [shape: bf16[32,64], index: 3, kind: input, shape index: {}]
  %s4 = inlined_call_operand.vmem [shape: bf16[64,32], index: 4, kind: input, shape index: {}]
  %s5 = inlined_call_operand.vmem [shape: bf16[32,64], index: 5, kind: input, shape index: {}]
  %s6 = inlined_call_operand.vmem [shape: f32[1,96], index: 6, kind: input, shape index: {}]
  %s7 = inlined_call_operand.vmem [shape: f32[1,64], index: 7, kind: input, shape index: {}]
  %s8 = inlined_call_operand.vmem [shape: f32[8,32], index: 8, kind: input, shape index: {}]
  %s9 = inlined_call_operand.hbm [shape: f32[2,8,32], index: 9, kind: output, shape index: {0}]
  %s10 = inlined_call_operand.hbm [shape: f32[2,8,64], index: 10, kind: output, shape index: {1}]
  %11 = xla_tuple %s9, %s10
  %s12 = sld [smem:[#allocation0]]
  $region58: #{tpu_custom_call.1} parent=0
    _
  %s14 = ssub.s32 1, %s12
  %s15 = scalar_select 0, %s14, %s12
  $region1: #{tpu_custom_call.1} parent=0
    #allocation2 [shape = 'u8[8192]{0}', space=vmem, size = 0x2000, scoped, tag = 'input window, operand 3, single buffered']
    #allocation3 [shape = 's32[1]{0}', space=sflag, size = 0x4, scoped, tag = 'scoped memory for tpu_custom_call.1']
    #allocation4 [shape = 's32[1]{0}', space=sflag, size = 0x4, scoped, tag = 'scoped memory for tpu_custom_call.1']
    #allocation5 [shape = 'u8[8192]{0}', space=vmem, size = 0x2000, scoped, tag = 'output window, operand 0, single buffered']
    #allocation6 [shape = 'u8[8192]{0}', space=vmem, size = 0x2000, scoped, tag = 'output window, operand 1, single buffered']
    #allocation7 [shape = 's32[1]{0}', space=sflag, size = 0x4, scoped, tag = 'scoped memory for tpu_custom_call.1']
    %16 = vsyncpa [#allocation3], 0
    %17 = vsyncpa [#allocation4], 0
    %18 = vsyncpa [#allocation7], 0
    // Predicated region
    $region2: #{tpu_custom_call.1} parent=1 // pred_check
      _
    $region3: #{tpu_custom_call.1} parent=1 // pred_check_branch
      %20 = sbr.rel (0) target = $region5
    $region4: #{tpu_custom_call.1} parent=1 // pred_region
      _
    $region5: #{tpu_custom_call.1} parent=1 // pred_fallthru
      _
    // Predicated region
    $region6: #{tpu_custom_call.1} parent=1 // pred_check
      _
    $region7: #{tpu_custom_call.1} parent=1 // pred_check_branch
      %22 = sbr.rel (0) target = $region9
    $region8: #{tpu_custom_call.1} parent=1 // pred_region
      _
    $region9: #{tpu_custom_call.1} parent=1 // pred_fallthru
      _
    // Predicated region
    $region10: #{tpu_custom_call.1} parent=1 // pred_check
      _
    $region11: #{tpu_custom_call.1} parent=1 // pred_check_branch
      %24 = sbr.rel (0) target = $region13
    $region12: #{tpu_custom_call.1} parent=1 // pred_region
      _
    $region13: #{tpu_custom_call.1} parent=1 // pred_fallthru
      _
    // Predicated region
    $region14: #{tpu_custom_call.1} parent=1 // pred_check
      _
    $region15: #{tpu_custom_call.1} parent=1 // pred_check_branch
      %26 = sbr.rel (0) target = $region17
    $region16: #{tpu_custom_call.1} parent=1 // pred_region
      %s28 = ssub.s32 256, 256
      %29 = vsyncadd [#allocation3], %s28
      %s30 = sshll.u32 [#allocation2], 4
      %s31 = int_to_ptr.vmem [resolvable:$true] %s30
      %36 = dma.hbm_to_vmem [thread:$0]  %s3, 256, %s31, [#allocation3], 64, 64, 4
    $region17: #{tpu_custom_call.1} parent=1 // pred_fallthru
      _
    // Predicated region
    $region18: #{tpu_custom_call.1} parent=1 // pred_check
      _
    $region19: #{tpu_custom_call.1} parent=1 // pred_check_branch
      %38 = sbr.rel (0) target = $region21
    $region20: #{tpu_custom_call.1} parent=1 // pred_region
      _
    $region21: #{tpu_custom_call.1} parent=1 // pred_fallthru
      _
    // Predicated region
    $region22: #{tpu_custom_call.1} parent=1 // pred_check
      _
    $region23: #{tpu_custom_call.1} parent=1 // pred_check_branch
      %40 = sbr.rel (0) target = $region25
    $region24: #{tpu_custom_call.1} parent=1 // pred_region
      _
    $region25: #{tpu_custom_call.1} parent=1 // pred_fallthru
      _
    // Predicated region
    $region26: #{tpu_custom_call.1} parent=1 // pred_check
      _
    $region27: #{tpu_custom_call.1} parent=1 // pred_check_branch
      %42 = sbr.rel (0) target = $region29
    $region28: #{tpu_custom_call.1} parent=1 // pred_region
      _
    $region29: #{tpu_custom_call.1} parent=1 // pred_fallthru
      _
    // Predicated region
    $region30: #{tpu_custom_call.1} parent=1 // pred_check
      _
    $region31: #{tpu_custom_call.1} parent=1 // pred_check_branch
      %44 = sbr.rel (0) target = $region33
    $region32: #{tpu_custom_call.1} parent=1 // pred_region
      _
    $region33: #{tpu_custom_call.1} parent=1 // pred_fallthru
      _
    // Predicated region
    $region34: #{tpu_custom_call.1} parent=1 // pred_check
      _
    $region35: #{tpu_custom_call.1} parent=1 // pred_check_branch
      %46 = sbr.rel (0) target = $region37
    $region36: #{tpu_custom_call.1} parent=1 // pred_region
      _
    $region37: #{tpu_custom_call.1} parent=1 // pred_fallthru
      _
    // Predicated region
    $region38: #{tpu_custom_call.1} parent=1 // pred_check
      _
    $region39: #{tpu_custom_call.1} parent=1 // pred_check_branch
      %48 = sbr.rel (0) target = $region41
    $region40: #{tpu_custom_call.1} parent=1 // pred_region
      %49 = dma.done [#allocation3], 256
    $region41: #{tpu_custom_call.1} parent=1 // pred_fallthru
      _
    %v51 = vld [vmem:[%s0] sm:$0xff]
    %v52 = vld [vmem:[%s0 + $0x8] sm:$0xff]
    %v53 = vld [vmem:[%s8] sm:$0x1]
    %v54 = vld [vmem:[%s8 + $0x1] sm:$0x1]
    %v55 = vld [vmem:[%s8 + $0x2] sm:$0x1]
    %v56 = vld [vmem:[%s8 + $0x3] sm:$0x1]
    %v57 = vld [vmem:[%s8 + $0x4] sm:$0x1]
    %v58 = vld [vmem:[%s8 + $0x5] sm:$0x1]
    %v59 = vpack.c.bf16 %v52, %v51
    %v60 = vld [vmem:[%s1] sm:$0xf]
    %v61 = vld [vmem:[%s1 + $0x4] sm:$0xf]
    %v62 = vld [vmem:[%s1 + $0x8] sm:$0xf]
    %v63 = vld [vmem:[%s1 + $0xc] sm:$0xf]
    %v64 = vld [vmem:[%s6] sm:$0x1]
    %v66 = vlaneseq
    %v67 = vshrl.u32 %v66, 7
    %v68 = vsub.s32 0, %v67
    %v69 = vrot.slane %v64, %v68
    %v75 = vunpack.c.l.b16 %v60
    %v76 = vunpack.c.l.b16 %v61
    %v77 = vunpack.c.l.b16 %v62
    %v78 = vunpack.c.l.b16 %v63
    %v79 = vpack.c.b16 %v76, %v75
    %v80 = vpack.c.b16 %v78, %v77
    %vm83 = vcmask 261120
    %v85 = vsel %vm83, %v59, 0
    %87 = vmatprep.subr.bf16.mxu0 0
    %88 = vmatpush1.bf16.msra.mxu0 %v79
    %89 = vmatprep.subr.bf16.mxu0 0
    %90 = vmatpush1.bf16.msra.mxu0 %v80
    %91 = vmatprep.subr.bf16.mxu0 0
    %92 = vmatpush1.bf16.msra.mxu0 0
    %93 = vmatprep.subr.bf16.mxu0 0
    %94 = vmatpush1.bf16.msra.mxu0 0
    %95 = vmatprep.subr.bf16.mxu0 0
    %96 = vmatpush1.bf16.msra.mxu0 0
    %97 = vmatprep.subr.bf16.mxu0 0
    %98 = vmatpush1.bf16.msra.mxu0 0
    %99 = vmatprep.subr.bf16.mxu0 0
    %100 = vmatpush1.bf16.msra.mxu0 0
    %101 = vmatprep.subr.bf16.mxu0 0
    %102 = vmatpush1.bf16.msra.mxu0 0
    %103 = vmatprep.subr.bf16.mxu0 0
    %104 = vmatpush1.bf16.msra.mxu0 0
    %105 = vmatprep.subr.bf16.mxu0 0
    %106 = vmatpush1.bf16.msra.mxu0 0
    %107 = vmatprep.subr.bf16.mxu0 0
    %108 = vmatpush1.bf16.msra.mxu0 0
    %109 = vmatprep.subr.bf16.mxu0 0
    %110 = vmatpush1.bf16.msra.mxu0 0
    %111 = vmatprep.subr.bf16.mxu0 0
    %112 = vmatpush1.bf16.msra.mxu0 0
    %113 = vmatprep.subr.bf16.mxu0 0
    %114 = vmatpush1.bf16.msra.mxu0 0
    %115 = vmatprep.subr.bf16.mxu0 0
    %116 = vmatpush1.bf16.msra.mxu0 0
    %117 = vmatprep.subr.bf16.mxu0 0
    %118 = vmatpush1.bf16.msra.mxu0 0
    %119 = vmatprep.mubr.bf16.mxu0 0
    %120 = vmatmul.mubr.bf16.gmra.mrb[0].mxu0 %v85
    %v121 = vpop.f32.mrb[0].mxu0
    %v122 = vadd.f32 %v69, %v121
    %v123 = vpop.f32.mrb[0].mxu0
    %v124 = vpop.f32.mrb[0].mxu0
    %v125 = vadd.f32 %v69, %v124
    %v126 = vpop.f32.mrb[0].mxu0
    %127 = vdwg.mxu0
    %v128 = vmul.f32 %v122, 0.25
    %v129 = vmul.f32 %v125, 0.25
    %v130 = vlaneseq
    %v131 = vshrl.u32 %v130, 7
    %v132 = vlaneseq
    %v133 = vand.u32 %v132, 127
    %vm134 = vcmp.gt.s32.totalorder %v133, %v131
    %v135 = vsel %vm134, -1e+30, 0.0
    %v136 = vpack.c.bf16 %v128, %v128
    %v137 = vpack.c.bf16 %v122, %v122
    %139 = vrot.lane.b32.xlu0 %v137, 96
    %v140 = vpop.permute.xlu0 %139
    %vm141 = vcmask 130048
    %v143 = vsel %vm141, %v136, 0
    %v146 = vsel %vm141, %v140, 0
    %148 = vmatprep.subr.bf16.mxu0 0
    %149 = vmatpush1.bf16.xpose.msra.mxu0 %v146
    %150 = vmatprep.subr.bf16.mxu0 0
    %151 = vmatpush1.bf16.xpose.msra.mxu0 0
    %152 = vmatprep.subr.bf16.mxu0 0
    %153 = vmatpush1.bf16.xpose.msra.mxu0 0
    %154 = vmatprep.subr.bf16.mxu0 0
    %155 = vmatpush1.bf16.xpose.msra.mxu0 0
    %156 = vmatprep.subr.bf16.mxu0 0
    %157 = vmatpush1.bf16.xpose.msra.mxu0 0
    %158 = vmatprep.subr.bf16.mxu0 0
    %159 = vmatpush1.bf16.xpose.msra.mxu0 0
    %160 = vmatprep.subr.bf16.mxu0 0
    %161 = vmatpush1.bf16.xpose.msra.mxu0 0
    %162 = vmatprep.subr.bf16.mxu0 0
    %163 = vmatpush1.bf16.xpose.msra.mxu0 0
    %164 = vmatprep.subr.bf16.mxu0 0
    %165 = vmatpush1.bf16.xpose.msra.mxu0 0
    %166 = vmatprep.subr.bf16.mxu0 0
    %167 = vmatpush1.bf16.xpose.msra.mxu0 0
    %168 = vmatprep.subr.bf16.mxu0 0
    %169 = vmatpush1.bf16.xpose.msra.mxu0 0
    %170 = vmatprep.subr.bf16.mxu0 0
    %171 = vmatpush1.bf16.xpose.msra.mxu0 0
    %172 = vmatprep.subr.bf16.mxu0 0
    %173 = vmatpush1.bf16.xpose.msra.mxu0 0
    %174 = vmatprep.subr.bf16.mxu0 0
    %175 = vmatpush1.bf16.xpose.msra.mxu0 0
    %176 = vmatprep.subr.bf16.mxu0 0
    %177 = vmatpush1.bf16.xpose.msra.mxu0 0
    %178 = vmatprep.subr.bf16.mxu0 0
    %179 = vmatpush1.bf16.xpose.msra.mxu0 0
    %180 = vmatprep.mubr.bf16.mxu0 0
    %181 = vmatmul.mubr.bf16.gmra.mrb[0].mxu0 %v143
    %v182 = vpop.f32.mrb[0].mxu0
    %v183 = vadd.f32 %v135, %v182
    %v184 = vpop.f32.mrb[0].mxu0
    %v185 = vpop.f32.mrb[0].mxu0
    %v186 = vpop.f32.mrb[0].mxu0
    %187 = vdwg.mxu0
    %vm188 = vcmask 64512
    %v189 = vsel %vm188, %v183, -inf
    %190 = vmax.xlane.f32.xlu0 %v189
    %v191 = vpop.xlane.xlu0 %190
    %v192 = vsub.f32 %v183, %v191
    %v193 = vmul.f32 %v192, 1.442695
    %v194 = vpow.pop %v193
    %v195 = vsel %vm188, %v194, 0.0
    %196 = vadd.xlane.f32.xlu0 %v195
    %v197 = vpop.xlane.xlu0 %196
    %v198 = vrcp.pop %v197
    %v199 = vmul.f32 %v194, %v198
    %v200 = vpack.c.bf16 %v199, %v199
    %201 = vrot.lane.b32.xlu0 %v137, 64
    %v202 = vpop.permute.xlu0 %201
    %v204 = vsel %vm188, %v200, 0
    %vm206 = vcmask 1043456
    %v208 = vsel %vm206, %v202, 0
    %210 = vmatprep.subr.bf16.mxu0 0
    %211 = vmatpush1.bf16.msra.mxu0 %v208
    %212 = vmatprep.subr.bf16.mxu0 0
    %213 = vmatpush1.bf16.msra.mxu0 0
    %214 = vmatprep.subr.bf16.mxu0 0
    %215 = vmatpush1.bf16.msra.mxu0 0
    %216 = vmatprep.subr.bf16.mxu0 0
    %217 = vmatpush1.bf16.msra.mxu0 0
    %218 = vmatprep.subr.bf16.mxu0 0
    %219 = vmatpush1.bf16.msra.mxu0 0
    %220 = vmatprep.subr.bf16.mxu0 0
    %221 = vmatpush1.bf16.msra.mxu0 0
    %222 = vmatprep.subr.bf16.mxu0 0
    %223 = vmatpush1.bf16.msra.mxu0 0
    %224 = vmatprep.subr.bf16.mxu0 0
    %225 = vmatpush1.bf16.msra.mxu0 0
    %226 = vmatprep.subr.bf16.mxu0 0
    %227 = vmatpush1.bf16.msra.mxu0 0
    %228 = vmatprep.subr.bf16.mxu0 0
    %229 = vmatpush1.bf16.msra.mxu0 0
    %230 = vmatprep.subr.bf16.mxu0 0
    %231 = vmatpush1.bf16.msra.mxu0 0
    %232 = vmatprep.subr.bf16.mxu0 0
    %233 = vmatpush1.bf16.msra.mxu0 0
    %234 = vmatprep.subr.bf16.mxu0 0
    %235 = vmatpush1.bf16.msra.mxu0 0
    %236 = vmatprep.subr.bf16.mxu0 0
    %237 = vmatpush1.bf16.msra.mxu0 0
    %238 = vmatprep.subr.bf16.mxu0 0
    %239 = vmatpush1.bf16.msra.mxu0 0
    %240 = vmatprep.subr.bf16.mxu0 0
    %241 = vmatpush1.bf16.msra.mxu0 0
    %242 = vmatprep.mubr.bf16.mxu0 0
    %243 = vmatmul.mubr.bf16.gmra.mrb[0].mxu0 %v204
    %v244 = vpop.f32.mrb[0].mxu0
    %v245 = vadd.f32 0.0, %v244
    %v246 = vpop.f32.mrb[0].mxu0
    %v247 = vpop.f32.mrb[0].mxu0
    %v248 = vpop.f32.mrb[0].mxu0
    %249 = vdwg.mxu0
    %v250 = vpack.c.bf16 %v245, %v245
    %v251 = vld [vmem:[%s2] sm:$0xf]
    %v252 = vld [vmem:[%s2 + $0x4] sm:$0xf]
    %254 = vrot.lane.b32.xlu0 %v136, 112
    %v255 = vpop.permute.xlu0 %254
    %256 = vrot.lane.b32.xlu0 %v137, 80
    %v257 = vpop.permute.xlu0 %256
    %v259 = vsel %vm141, %v255, 0
    %v262 = vsel %vm141, %v257, 0
    %264 = vmatprep.subr.bf16.mxu0 0
    %265 = vmatpush1.bf16.xpose.msra.mxu0 %v262
    %266 = vmatprep.subr.bf16.mxu0 0
    %267 = vmatpush1.bf16.xpose.msra.mxu0 0
    %268 = vmatprep.subr.bf16.mxu0 0
    %269 = vmatpush1.bf16.xpose.msra.mxu0 0
    %270 = vmatprep.subr.bf16.mxu0 0
    %271 = vmatpush1.bf16.xpose.msra.mxu0 0
    %272 = vmatprep.subr.bf16.mxu0 0
    %273 = vmatpush1.bf16.xpose.msra.mxu0 0
    %274 = vmatprep.subr.bf16.mxu0 0
    %275 = vmatpush1.bf16.xpose.msra.mxu0 0
    %276 = vmatprep.subr.bf16.mxu0 0
    %277 = vmatpush1.bf16.xpose.msra.mxu0 0
    %278 = vmatprep.subr.bf16.mxu0 0
    %279 = vmatpush1.bf16.xpose.msra.mxu0 0
    %280 = vmatprep.subr.bf16.mxu0 0
    %281 = vmatpush1.bf16.xpose.msra.mxu0 0
    %282 = vmatprep.subr.bf16.mxu0 0
    %283 = vmatpush1.bf16.xpose.msra.mxu0 0
    %284 = vmatprep.subr.bf16.mxu0 0
    %285 = vmatpush1.bf16.xpose.msra.mxu0 0
    %286 = vmatprep.subr.bf16.mxu0 0
    %287 = vmatpush1.bf16.xpose.msra.mxu0 0
    %288 = vmatprep.subr.bf16.mxu0 0
    %289 = vmatpush1.bf16.xpose.msra.mxu0 0
    %290 = vmatprep.subr.bf16.mxu0 0
    %291 = vmatpush1.bf16.xpose.msra.mxu0 0
    %292 = vmatprep.subr.bf16.mxu0 0
    %293 = vmatpush1.bf16.xpose.msra.mxu0 0
    %294 = vmatprep.subr.bf16.mxu0 0
    %295 = vmatpush1.bf16.xpose.msra.mxu0 0
    %296 = vmatprep.mubr.bf16.mxu0 0
    %297 = vmatmul.mubr.bf16.gmra.mrb[0].mxu0 %v259
    %v298 = vpop.f32.mrb[0].mxu0
    %v299 = vadd.f32 %v135, %v298
    %v300 = vpop.f32.mrb[0].mxu0
    %v301 = vpop.f32.mrb[0].mxu0
    %v302 = vpop.f32.mrb[0].mxu0
    %303 = vdwg.mxu0
    %v304 = vsel %vm188, %v299, -inf
    %305 = vmax.xlane.f32.xlu0 %v304
    %v306 = vpop.xlane.xlu0 %305
    %v307 = vsub.f32 %v299, %v306
    %v308 = vmul.f32 %v307, 1.442695
    %v309 = vpow.pop %v308
    %v310 = vsel %vm188, %v309, 0.0
    %311 = vadd.xlane.f32.xlu0 %v310
    %v312 = vpop.xlane.xlu0 %311
    %v313 = vrcp.pop %v312
    %v314 = vmul.f32 %v309, %v313
    %v315 = vpack.c.bf16 %v314, %v314
    %316 = vrot.lane.b32.xlu0 %v137, 48
    %v317 = vpop.permute.xlu0 %316
    %v319 = vsel %vm188, %v315, 0
    %v322 = vsel %vm206, %v317, 0
    %324 = vmatprep.subr.bf16.mxu0 0
    %325 = vmatpush1.bf16.msra.mxu0 %v322
    %326 = vmatprep.subr.bf16.mxu0 0
    %327 = vmatpush1.bf16.msra.mxu0 0
    %328 = vmatprep.subr.bf16.mxu0 0
    %329 = vmatpush1.bf16.msra.mxu0 0
    %330 = vmatprep.subr.bf16.mxu0 0
    %331 = vmatpush1.bf16.msra.mxu0 0
    %332 = vmatprep.subr.bf16.mxu0 0
    %333 = vmatpush1.bf16.msra.mxu0 0
    %334 = vmatprep.subr.bf16.mxu0 0
    %335 = vmatpush1.bf16.msra.mxu0 0
    %336 = vmatprep.subr.bf16.mxu0 0
    %337 = vmatpush1.bf16.msra.mxu0 0
    %338 = vmatprep.subr.bf16.mxu0 0
    %339 = vmatpush1.bf16.msra.mxu0 0
    %340 = vmatprep.subr.bf16.mxu0 0
    %341 = vmatpush1.bf16.msra.mxu0 0
    %342 = vmatprep.subr.bf16.mxu0 0
    %343 = vmatpush1.bf16.msra.mxu0 0
    %344 = vmatprep.subr.bf16.mxu0 0
    %345 = vmatpush1.bf16.msra.mxu0 0
    %346 = vmatprep.subr.bf16.mxu0 0
    %347 = vmatpush1.bf16.msra.mxu0 0
    %348 = vmatprep.subr.bf16.mxu0 0
    %349 = vmatpush1.bf16.msra.mxu0 0
    %350 = vmatprep.subr.bf16.mxu0 0
    %351 = vmatpush1.bf16.msra.mxu0 0
    %352 = vmatprep.subr.bf16.mxu0 0
    %353 = vmatpush1.bf16.msra.mxu0 0
    %354 = vmatprep.subr.bf16.mxu0 0
    %355 = vmatpush1.bf16.msra.mxu0 0
    %356 = vmatprep.mubr.bf16.mxu0 0
    %357 = vmatmul.mubr.bf16.gmra.mrb[0].mxu0 %v319
    %v358 = vpop.f32.mrb[0].mxu0
    %v359 = vadd.f32 0.0, %v358
    %v360 = vpop.f32.mrb[0].mxu0
    %v361 = vpop.f32.mrb[0].mxu0
    %v362 = vpop.f32.mrb[0].mxu0
    %363 = vdwg.mxu0
    %v364 = vpack.c.bf16 %v359, %v359
    %v365 = vld [vmem:[%s2 + $0x8] sm:$0xf]
    %v366 = vld [vmem:[%s2 + $0xc] sm:$0xf]
    %v369 = vunpack.c.l.b16 %v365
    %v370 = vunpack.c.l.b16 %v366
    %v371 = vpack.c.b16 %v370, %v369
    %v374 = vsel %vm141, %v364, 0
    %376 = vmatprep.subr.bf16.mxu0 0
    %377 = vmatpush1.bf16.msra.mxu0 %v371
    %378 = vmatprep.subr.bf16.mxu0 0
    %379 = vmatpush1.bf16.msra.mxu0 0
    %380 = vmatprep.subr.bf16.mxu0 0
    %381 = vmatpush1.bf16.msra.mxu0 0
    %382 = vmatprep.subr.bf16.mxu0 0
    %383 = vmatpush1.bf16.msra.mxu0 0
    %384 = vmatprep.subr.bf16.mxu0 0
    %385 = vmatpush1.bf16.msra.mxu0 0
    %386 = vmatprep.subr.bf16.mxu0 0
    %387 = vmatpush1.bf16.msra.mxu0 0
    %388 = vmatprep.subr.bf16.mxu0 0
    %389 = vmatpush1.bf16.msra.mxu0 0
    %390 = vmatprep.subr.bf16.mxu0 0
    %391 = vmatpush1.bf16.msra.mxu0 0
    %392 = vmatprep.subr.bf16.mxu0 0
    %393 = vmatpush1.bf16.msra.mxu0 0
    %394 = vmatprep.subr.bf16.mxu0 0
    %395 = vmatpush1.bf16.msra.mxu0 0
    %396 = vmatprep.subr.bf16.mxu0 0
    %397 = vmatpush1.bf16.msra.mxu0 0
    %398 = vmatprep.subr.bf16.mxu0 0
    %399 = vmatpush1.bf16.msra.mxu0 0
    %400 = vmatprep.subr.bf16.mxu0 0
    %401 = vmatpush1.bf16.msra.mxu0 0
    %402 = vmatprep.subr.bf16.mxu0 0
    %403 = vmatpush1.bf16.msra.mxu0 0
    %404 = vmatprep.subr.bf16.mxu0 0
    %405 = vmatpush1.bf16.msra.mxu0 0
    %406 = vmatprep.subr.bf16.mxu0 0
    %407 = vmatpush1.bf16.msra.mxu0 0
    %408 = vmatprep.mubr.bf16.mxu0 0
    %409 = vmatmul.mubr.bf16.gmra.mrb[0].mxu0 %v374
    %v410 = vpop.f32.mrb[0].mxu0
    %v411 = vadd.f32 0.0, %v410
    %v412 = vpop.f32.mrb[0].mxu0
    %v413 = vpop.f32.mrb[0].mxu0
    %v414 = vpop.f32.mrb[0].mxu0
    %415 = vdwg.mxu0
    %v418 = vunpack.c.l.b16 %v251
    %v419 = vunpack.c.l.b16 %v252
    %v420 = vpack.c.b16 %v419, %v418
    %v423 = vsel %vm141, %v250, 0
    %425 = vmatprep.subr.bf16.mxu0 0
    %426 = vmatpush1.bf16.msra.mxu0 %v420
    %427 = vmatprep.subr.bf16.mxu0 0
    %428 = vmatpush1.bf16.msra.mxu0 0
    %429 = vmatprep.subr.bf16.mxu0 0
    %430 = vmatpush1.bf16.msra.mxu0 0
    %431 = vmatprep.subr.bf16.mxu0 0
    %432 = vmatpush1.bf16.msra.mxu0 0
    %433 = vmatprep.subr.bf16.mxu0 0
    %434 = vmatpush1.bf16.msra.mxu0 0
    %435 = vmatprep.subr.bf16.mxu0 0
    %436 = vmatpush1.bf16.msra.mxu0 0
    %437 = vmatprep.subr.bf16.mxu0 0
    %438 = vmatpush1.bf16.msra.mxu0 0
    %439 = vmatprep.subr.bf16.mxu0 0
    %440 = vmatpush1.bf16.msra.mxu0 0
    %441 = vmatprep.subr.bf16.mxu0 0
    %442 = vmatpush1.bf16.msra.mxu0 0
    %443 = vmatprep.subr.bf16.mxu0 0
    %444 = vmatpush1.bf16.msra.mxu0 0
    %445 = vmatprep.subr.bf16.mxu0 0
    %446 = vmatpush1.bf16.msra.mxu0 0
    %447 = vmatprep.subr.bf16.mxu0 0
    %448 = vmatpush1.bf16.msra.mxu0 0
    %449 = vmatprep.subr.bf16.mxu0 0
    %450 = vmatpush1.bf16.msra.mxu0 0
    %451 = vmatprep.subr.bf16.mxu0 0
    %452 = vmatpush1.bf16.msra.mxu0 0
    %453 = vmatprep.subr.bf16.mxu0 0
    %454 = vmatpush1.bf16.msra.mxu0 0
    %455 = vmatprep.subr.bf16.mxu0 0
    %456 = vmatpush1.bf16.msra.mxu0 0
    %457 = vmatprep.mubr.bf16.mxu0 0
    %458 = vmatmul.mubr.bf16.gmra.mrb[0].mxu0 %v423
    %v459 = vpop.f32.mrb[0].mxu0
    %v460 = vadd.f32 %v411, %v459
    %v461 = vpop.f32.mrb[0].mxu0
    %v462 = vpop.f32.mrb[0].mxu0
    %v463 = vpop.f32.mrb[0].mxu0
    %464 = vdwg.mxu0
    %v465 = vpack.c.bf16 %v129, %v129
    %v466 = vpack.c.bf16 %v125, %v125
    %468 = vrot.lane.b32.xlu0 %v466, 96
    %v469 = vpop.permute.xlu0 %468
    %v471 = vsel %vm141, %v465, 0
    %v474 = vsel %vm141, %v469, 0
    %476 = vmatprep.subr.bf16.mxu0 0
    %477 = vmatpush1.bf16.xpose.msra.mxu0 %v474
    %478 = vmatprep.subr.bf16.mxu0 0
    %479 = vmatpush1.bf16.xpose.msra.mxu0 0
    %480 = vmatprep.subr.bf16.mxu0 0
    %481 = vmatpush1.bf16.xpose.msra.mxu0 0
    %482 = vmatprep.subr.bf16.mxu0 0
    %483 = vmatpush1.bf16.xpose.msra.mxu0 0
    %484 = vmatprep.subr.bf16.mxu0 0
    %485 = vmatpush1.bf16.xpose.msra.mxu0 0
    %486 = vmatprep.subr.bf16.mxu0 0
    %487 = vmatpush1.bf16.xpose.msra.mxu0 0
    %488 = vmatprep.subr.bf16.mxu0 0
    %489 = vmatpush1.bf16.xpose.msra.mxu0 0
    %490 = vmatprep.subr.bf16.mxu0 0
    %491 = vmatpush1.bf16.xpose.msra.mxu0 0
    %492 = vmatprep.subr.bf16.mxu0 0
    %493 = vmatpush1.bf16.xpose.msra.mxu0 0
    %494 = vmatprep.subr.bf16.mxu0 0
    %495 = vmatpush1.bf16.xpose.msra.mxu0 0
    %496 = vmatprep.subr.bf16.mxu0 0
    %497 = vmatpush1.bf16.xpose.msra.mxu0 0
    %498 = vmatprep.subr.bf16.mxu0 0
    %499 = vmatpush1.bf16.xpose.msra.mxu0 0
    %500 = vmatprep.subr.bf16.mxu0 0
    %501 = vmatpush1.bf16.xpose.msra.mxu0 0
    %502 = vmatprep.subr.bf16.mxu0 0
    %503 = vmatpush1.bf16.xpose.msra.mxu0 0
    %504 = vmatprep.subr.bf16.mxu0 0
    %505 = vmatpush1.bf16.xpose.msra.mxu0 0
    %506 = vmatprep.subr.bf16.mxu0 0
    %507 = vmatpush1.bf16.xpose.msra.mxu0 0
    %508 = vmatprep.mubr.bf16.mxu0 0
    %509 = vmatmul.mubr.bf16.gmra.mrb[0].mxu0 %v471
    %v510 = vpop.f32.mrb[0].mxu0
    %v511 = vadd.f32 %v135, %v510
    %v512 = vpop.f32.mrb[0].mxu0
    %v513 = vpop.f32.mrb[0].mxu0
    %v514 = vpop.f32.mrb[0].mxu0
    %515 = vdwg.mxu0
    %v516 = vsel %vm188, %v511, -inf
    %517 = vmax.xlane.f32.xlu0 %v516
    %v518 = vpop.xlane.xlu0 %517
    %v519 = vsub.f32 %v511, %v518
    %v520 = vmul.f32 %v519, 1.442695
    %v521 = vpow.pop %v520
    %v522 = vsel %vm188, %v521, 0.0
    %523 = vadd.xlane.f32.xlu0 %v522
    %v524 = vpop.xlane.xlu0 %523
    %v525 = vrcp.pop %v524
    %v526 = vmul.f32 %v521, %v525
    %v527 = vpack.c.bf16 %v526, %v526
    %528 = vrot.lane.b32.xlu0 %v466, 64
    %v529 = vpop.permute.xlu0 %528
    %v531 = vsel %vm188, %v527, 0
    %v534 = vsel %vm206, %v529, 0
    %536 = vmatprep.subr.bf16.mxu0 0
    %537 = vmatpush1.bf16.msra.mxu0 %v534
    %538 = vmatprep.subr.bf16.mxu0 0
    %539 = vmatpush1.bf16.msra.mxu0 0
    %540 = vmatprep.subr.bf16.mxu0 0
    %541 = vmatpush1.bf16.msra.mxu0 0
    %542 = vmatprep.subr.bf16.mxu0 0
    %543 = vmatpush1.bf16.msra.mxu0 0
    %544 = vmatprep.subr.bf16.mxu0 0
    %545 = vmatpush1.bf16.msra.mxu0 0
    %546 = vmatprep.subr.bf16.mxu0 0
    %547 = vmatpush1.bf16.msra.mxu0 0
    %548 = vmatprep.subr.bf16.mxu0 0
    %549 = vmatpush1.bf16.msra.mxu0 0
    %550 = vmatprep.subr.bf16.mxu0 0
    %551 = vmatpush1.bf16.msra.mxu0 0
    %552 = vmatprep.subr.bf16.mxu0 0
    %553 = vmatpush1.bf16.msra.mxu0 0
    %554 = vmatprep.subr.bf16.mxu0 0
    %555 = vmatpush1.bf16.msra.mxu0 0
    %556 = vmatprep.subr.bf16.mxu0 0
    %557 = vmatpush1.bf16.msra.mxu0 0
    %558 = vmatprep.subr.bf16.mxu0 0
    %559 = vmatpush1.bf16.msra.mxu0 0
    %560 = vmatprep.subr.bf16.mxu0 0
    %561 = vmatpush1.bf16.msra.mxu0 0
    %562 = vmatprep.subr.bf16.mxu0 0
    %563 = vmatpush1.bf16.msra.mxu0 0
    %564 = vmatprep.subr.bf16.mxu0 0
    %565 = vmatpush1.bf16.msra.mxu0 0
    %566 = vmatprep.subr.bf16.mxu0 0
    %567 = vmatpush1.bf16.msra.mxu0 0
    %568 = vmatprep.mubr.bf16.mxu0 0
    %569 = vmatmul.mubr.bf16.gmra.mrb[0].mxu0 %v531
    %v570 = vpop.f32.mrb[0].mxu0
    %v571 = vadd.f32 0.0, %v570
    %v572 = vpop.f32.mrb[0].mxu0
    %v573 = vpop.f32.mrb[0].mxu0
    %v574 = vpop.f32.mrb[0].mxu0
    %575 = vdwg.mxu0
    %v576 = vpack.c.bf16 %v571, %v571
    %578 = vrot.lane.b32.xlu0 %v465, 112
    %v579 = vpop.permute.xlu0 %578
    %580 = vrot.lane.b32.xlu0 %v466, 80
    %v581 = vpop.permute.xlu0 %580
    %v583 = vsel %vm141, %v579, 0
    %v586 = vsel %vm141, %v581, 0
    %588 = vmatprep.subr.bf16.mxu0 0
    %589 = vmatpush1.bf16.xpose.msra.mxu0 %v586
    %590 = vmatprep.subr.bf16.mxu0 0
    %591 = vmatpush1.bf16.xpose.msra.mxu0 0
    %592 = vmatprep.subr.bf16.mxu0 0
    %593 = vmatpush1.bf16.xpose.msra.mxu0 0
    %594 = vmatprep.subr.bf16.mxu0 0
    %595 = vmatpush1.bf16.xpose.msra.mxu0 0
    %596 = vmatprep.subr.bf16.mxu0 0
    %597 = vmatpush1.bf16.xpose.msra.mxu0 0
    %598 = vmatprep.subr.bf16.mxu0 0
    %599 = vmatpush1.bf16.xpose.msra.mxu0 0
    %600 = vmatprep.subr.bf16.mxu0 0
    %601 = vmatpush1.bf16.xpose.msra.mxu0 0
    %602 = vmatprep.subr.bf16.mxu0 0
    %603 = vmatpush1.bf16.xpose.msra.mxu0 0
    %604 = vmatprep.subr.bf16.mxu0 0
    %605 = vmatpush1.bf16.xpose.msra.mxu0 0
    %606 = vmatprep.subr.bf16.mxu0 0
    %607 = vmatpush1.bf16.xpose.msra.mxu0 0
    %608 = vmatprep.subr.bf16.mxu0 0
    %609 = vmatpush1.bf16.xpose.msra.mxu0 0
    %610 = vmatprep.subr.bf16.mxu0 0
    %611 = vmatpush1.bf16.xpose.msra.mxu0 0
    %612 = vmatprep.subr.bf16.mxu0 0
    %613 = vmatpush1.bf16.xpose.msra.mxu0 0
    %614 = vmatprep.subr.bf16.mxu0 0
    %615 = vmatpush1.bf16.xpose.msra.mxu0 0
    %616 = vmatprep.subr.bf16.mxu0 0
    %617 = vmatpush1.bf16.xpose.msra.mxu0 0
    %618 = vmatprep.subr.bf16.mxu0 0
    %619 = vmatpush1.bf16.xpose.msra.mxu0 0
    %620 = vmatprep.mubr.bf16.mxu0 0
    %621 = vmatmul.mubr.bf16.gmra.mrb[0].mxu0 %v583
    %v622 = vpop.f32.mrb[0].mxu0
    %v623 = vadd.f32 %v135, %v622
    %v624 = vpop.f32.mrb[0].mxu0
    %v625 = vpop.f32.mrb[0].mxu0
    %v626 = vpop.f32.mrb[0].mxu0
    %627 = vdwg.mxu0
    %v628 = vsel %vm188, %v623, -inf
    %629 = vmax.xlane.f32.xlu0 %v628
    %v630 = vpop.xlane.xlu0 %629
    %v631 = vsub.f32 %v623, %v630
    %v632 = vmul.f32 %v631, 1.442695
    %v633 = vpow.pop %v632
    %v634 = vsel %vm188, %v633, 0.0
    %635 = vadd.xlane.f32.xlu0 %v634
    %v636 = vpop.xlane.xlu0 %635
    %v637 = vrcp.pop %v636
    %v638 = vmul.f32 %v633, %v637
    %v639 = vpack.c.bf16 %v638, %v638
    %640 = vrot.lane.b32.xlu0 %v466, 48
    %v641 = vpop.permute.xlu0 %640
    %v643 = vsel %vm188, %v639, 0
    %v646 = vsel %vm206, %v641, 0
    %648 = vmatprep.subr.bf16.mxu0 0
    %649 = vmatpush1.bf16.msra.mxu0 %v646
    %650 = vmatprep.subr.bf16.mxu0 0
    %651 = vmatpush1.bf16.msra.mxu0 0
    %652 = vmatprep.subr.bf16.mxu0 0
    %653 = vmatpush1.bf16.msra.mxu0 0
    %654 = vmatprep.subr.bf16.mxu0 0
    %655 = vmatpush1.bf16.msra.mxu0 0
    %656 = vmatprep.subr.bf16.mxu0 0
    %657 = vmatpush1.bf16.msra.mxu0 0
    %658 = vmatprep.subr.bf16.mxu0 0
    %659 = vmatpush1.bf16.msra.mxu0 0
    %660 = vmatprep.subr.bf16.mxu0 0
    %661 = vmatpush1.bf16.msra.mxu0 0
    %662 = vmatprep.subr.bf16.mxu0 0
    %663 = vmatpush1.bf16.msra.mxu0 0
    %664 = vmatprep.subr.bf16.mxu0 0
    %665 = vmatpush1.bf16.msra.mxu0 0
    %666 = vmatprep.subr.bf16.mxu0 0
    %667 = vmatpush1.bf16.msra.mxu0 0
    %668 = vmatprep.subr.bf16.mxu0 0
    %669 = vmatpush1.bf16.msra.mxu0 0
    %670 = vmatprep.subr.bf16.mxu0 0
    %671 = vmatpush1.bf16.msra.mxu0 0
    %672 = vmatprep.subr.bf16.mxu0 0
    %673 = vmatpush1.bf16.msra.mxu0 0
    %674 = vmatprep.subr.bf16.mxu0 0
    %675 = vmatpush1.bf16.msra.mxu0 0
    %676 = vmatprep.subr.bf16.mxu0 0
    %677 = vmatpush1.bf16.msra.mxu0 0
    %678 = vmatprep.subr.bf16.mxu0 0
    %679 = vmatpush1.bf16.msra.mxu0 0
    %680 = vmatprep.mubr.bf16.mxu0 0
    %681 = vmatmul.mubr.bf16.gmra.mrb[0].mxu0 %v643
    %v682 = vpop.f32.mrb[0].mxu0
    %v683 = vadd.f32 0.0, %v682
    %v684 = vpop.f32.mrb[0].mxu0
    %v685 = vpop.f32.mrb[0].mxu0
    %v686 = vpop.f32.mrb[0].mxu0
    %687 = vdwg.mxu0
    %v688 = vpack.c.bf16 %v683, %v683
    %v690 = vsel %vm141, %v688, 0
    %692 = vmatprep.subr.bf16.mxu0 0
    %693 = vmatpush1.bf16.msra.mxu0 %v371
    %694 = vmatprep.subr.bf16.mxu0 0
    %695 = vmatpush1.bf16.msra.mxu0 0
    %696 = vmatprep.subr.bf16.mxu0 0
    %697 = vmatpush1.bf16.msra.mxu0 0
    %698 = vmatprep.subr.bf16.mxu0 0
    %699 = vmatpush1.bf16.msra.mxu0 0
    %700 = vmatprep.subr.bf16.mxu0 0
    %701 = vmatpush1.bf16.msra.mxu0 0
    %702 = vmatprep.subr.bf16.mxu0 0
    %703 = vmatpush1.bf16.msra.mxu0 0
    %704 = vmatprep.subr.bf16.mxu0 0
    %705 = vmatpush1.bf16.msra.mxu0 0
    %706 = vmatprep.subr.bf16.mxu0 0
    %707 = vmatpush1.bf16.msra.mxu0 0
    %708 = vmatprep.subr.bf16.mxu0 0
    %709 = vmatpush1.bf16.msra.mxu0 0
    %710 = vmatprep.subr.bf16.mxu0 0
    %711 = vmatpush1.bf16.msra.mxu0 0
    %712 = vmatprep.subr.bf16.mxu0 0
    %713 = vmatpush1.bf16.msra.mxu0 0
    %714 = vmatprep.subr.bf16.mxu0 0
    %715 = vmatpush1.bf16.msra.mxu0 0
    %716 = vmatprep.subr.bf16.mxu0 0
    %717 = vmatpush1.bf16.msra.mxu0 0
    %718 = vmatprep.subr.bf16.mxu0 0
    %719 = vmatpush1.bf16.msra.mxu0 0
    %720 = vmatprep.subr.bf16.mxu0 0
    %721 = vmatpush1.bf16.msra.mxu0 0
    %722 = vmatprep.subr.bf16.mxu0 0
    %723 = vmatpush1.bf16.msra.mxu0 0
    %724 = vmatprep.mubr.bf16.mxu0 0
    %725 = vmatmul.mubr.bf16.gmra.mrb[0].mxu0 %v690
    %v726 = vpop.f32.mrb[0].mxu0
    %v727 = vadd.f32 0.0, %v726
    %v728 = vpop.f32.mrb[0].mxu0
    %v729 = vpop.f32.mrb[0].mxu0
    %v730 = vpop.f32.mrb[0].mxu0
    %731 = vdwg.mxu0
    %v733 = vsel %vm141, %v576, 0
    %735 = vmatprep.subr.bf16.mxu0 0
    %736 = vmatpush1.bf16.msra.mxu0 %v420
    %737 = vmatprep.subr.bf16.mxu0 0
    %738 = vmatpush1.bf16.msra.mxu0 0
    %739 = vmatprep.subr.bf16.mxu0 0
    %740 = vmatpush1.bf16.msra.mxu0 0
    %741 = vmatprep.subr.bf16.mxu0 0
    %742 = vmatpush1.bf16.msra.mxu0 0
    %743 = vmatprep.subr.bf16.mxu0 0
    %744 = vmatpush1.bf16.msra.mxu0 0
    %745 = vmatprep.subr.bf16.mxu0 0
    %746 = vmatpush1.bf16.msra.mxu0 0
    %747 = vmatprep.subr.bf16.mxu0 0
    %748 = vmatpush1.bf16.msra.mxu0 0
    %749 = vmatprep.subr.bf16.mxu0 0
    %750 = vmatpush1.bf16.msra.mxu0 0
    %751 = vmatprep.subr.bf16.mxu0 0
    %752 = vmatpush1.bf16.msra.mxu0 0
    %753 = vmatprep.subr.bf16.mxu0 0
    %754 = vmatpush1.bf16.msra.mxu0 0
    %755 = vmatprep.subr.bf16.mxu0 0
    %756 = vmatpush1.bf16.msra.mxu0 0
    %757 = vmatprep.subr.bf16.mxu0 0
    %758 = vmatpush1.bf16.msra.mxu0 0
    %759 = vmatprep.subr.bf16.mxu0 0
    %760 = vmatpush1.bf16.msra.mxu0 0
    %761 = vmatprep.subr.bf16.mxu0 0
    %762 = vmatpush1.bf16.msra.mxu0 0
    %763 = vmatprep.subr.bf16.mxu0 0
    %764 = vmatpush1.bf16.msra.mxu0 0
    %765 = vmatprep.subr.bf16.mxu0 0
    %766 = vmatpush1.bf16.msra.mxu0 0
    %767 = vmatprep.mubr.bf16.mxu0 0
    %768 = vmatmul.mubr.bf16.gmra.mrb[0].mxu0 %v733
    %v769 = vpop.f32.mrb[0].mxu0
    %v770 = vadd.f32 %v727, %v769
    %v771 = vpop.f32.mrb[0].mxu0
    %v772 = vpop.f32.mrb[0].mxu0
    %v773 = vpop.f32.mrb[0].mxu0
    %774 = vdwg.mxu0
    %v775 = vlaneseq
    %v776 = vshrl.u32 %v775, 7
    %v777 = vsub.s32 0, %v776
    %v778 = vrot.slane %v53, %v777
    %v779 = vadd.f32 %v460, %v778
    %v780 = vadd.f32 %v770, %v778
    %v781 = vadd.f32 %v51, %v779
    %v782 = vadd.f32 %v52, %v780
    %v783 = vsel %vm83, %v781, 0.0
    %784 = vadd.xlane.f32.xlu0 %v783
    %v785 = vpop.xlane.xlu0 %784
    %v786 = vsel %vm83, %v782, 0.0
    %787 = vadd.xlane.f32.xlu0 %v786
    %v788 = vpop.xlane.xlu0 %787
    %v789 = vrcp.pop 32.0
    %v790 = vmul.f32 %v785, %v789
    %v791 = vmul.f32 %v788, %v789
    %v792 = vsub.f32 %v781, %v790
    %v793 = vsub.f32 %v782, %v791
    %v794 = vmul.f32 %v792, %v792
    %v795 = vmul.f32 %v793, %v793
    %v796 = vsel %vm83, %v794, 0.0
    %797 = vadd.xlane.f32.xlu0 %v796
    %v798 = vpop.xlane.xlu0 %797
    %v799 = vsel %vm83, %v795, 0.0
    %800 = vadd.xlane.f32.xlu0 %v799
    %v801 = vpop.xlane.xlu0 %800
    %v802 = vmul.f32 %v798, %v789
    %v803 = vmul.f32 %v801, %v789
    %v804 = vadd.f32 %v802, 1e-05
    %v805 = vadd.f32 %v803, 1e-05
    %v806 = vrsqrt.pop %v804
    %v807 = vrsqrt.pop %v805
    %v808 = vmul.f32 %v792, %v806
    %v809 = vmul.f32 %v793, %v807
    %v810 = vlaneseq
    %v811 = vshrl.u32 %v810, 7
    %v812 = vsub.s32 0, %v811
    %v813 = vrot.slane %v54, %v812
    %v814 = vmul.f32 %v808, %v813
    %v815 = vmul.f32 %v809, %v813
    %v816 = vlaneseq
    %v817 = vshrl.u32 %v816, 7
    %v818 = vsub.s32 0, %v817
    %v819 = vrot.slane %v55, %v818
    %v820 = vadd.f32 %v814, %v819
    %v821 = vadd.f32 %v815, %v819
    %v822 = vpack.c.bf16 %v821, %v820
    %v823 = vld [vmem:[#allocation2] sm:$0xf]
    %v824 = vld [vmem:[#allocation2 + $0x4] sm:$0xf]
    %v825 = vld [vmem:[#allocation2 + $0x8] sm:$0xf]
    %v826 = vld [vmem:[#allocation2 + $0xc] sm:$0xf]
    %v827 = vld [vmem:[%s7] sm:$0x1]
    %v829 = vlaneseq
    %v830 = vshrl.u32 %v829, 7
    %v831 = vsub.s32 0, %v830
    %v832 = vrot.slane %v827, %v831
    %v838 = vunpack.c.l.b16 %v823
    %v839 = vunpack.c.l.b16 %v824
    %v840 = vunpack.c.l.b16 %v825
    %v841 = vunpack.c.l.b16 %v826
    %v842 = vpack.c.b16 %v839, %v838
    %v843 = vpack.c.b16 %v841, %v840
    %v847 = vsel %vm83, %v822, 0
    %849 = vmatprep.subr.bf16.mxu0 0
    %850 = vmatpush1.bf16.msra.mxu0 %v842
    %851 = vmatprep.subr.bf16.mxu0 0
    %852 = vmatpush1.bf16.msra.mxu0 %v843
    %853 = vmatprep.subr.bf16.mxu0 0
    %854 = vmatpush1.bf16.msra.mxu0 0
    %855 = vmatprep.subr.bf16.mxu0 0
    %856 = vmatpush1.bf16.msra.mxu0 0
    %857 = vmatprep.subr.bf16.mxu0 0
    %858 = vmatpush1.bf16.msra.mxu0 0
    %859 = vmatprep.subr.bf16.mxu0 0
    %860 = vmatpush1.bf16.msra.mxu0 0
    %861 = vmatprep.subr.bf16.mxu0 0
    %862 = vmatpush1.bf16.msra.mxu0 0
    %863 = vmatprep.subr.bf16.mxu0 0
    %864 = vmatpush1.bf16.msra.mxu0 0
    %865 = vmatprep.subr.bf16.mxu0 0
    %866 = vmatpush1.bf16.msra.mxu0 0
    %867 = vmatprep.subr.bf16.mxu0 0
    %868 = vmatpush1.bf16.msra.mxu0 0
    %869 = vmatprep.subr.bf16.mxu0 0
    %870 = vmatpush1.bf16.msra.mxu0 0
    %871 = vmatprep.subr.bf16.mxu0 0
    %872 = vmatpush1.bf16.msra.mxu0 0
    %873 = vmatprep.subr.bf16.mxu0 0
    %874 = vmatpush1.bf16.msra.mxu0 0
    %875 = vmatprep.subr.bf16.mxu0 0
    %876 = vmatpush1.bf16.msra.mxu0 0
    %877 = vmatprep.subr.bf16.mxu0 0
    %878 = vmatpush1.bf16.msra.mxu0 0
    %879 = vmatprep.subr.bf16.mxu0 0
    %880 = vmatpush1.bf16.msra.mxu0 0
    %881 = vmatprep.mubr.bf16.mxu0 0
    %882 = vmatmul.mubr.bf16.gmra.mrb[0].mxu0 %v847
    %v883 = vpop.f32.mrb[0].mxu0
    %v884 = vadd.f32 %v832, %v883
    %v885 = vpop.f32.mrb[0].mxu0
    %v886 = vpop.f32.mrb[0].mxu0
    %v887 = vadd.f32 %v832, %v886
    %v888 = vpop.f32.mrb[0].mxu0
    %889 = vdwg.mxu0
    %v890 = vmul.f32 %v884, 0.5
    %v891 = vmul.f32 %v887, 0.5
    %v892 = vmul.f32 %v884, 0.70710677
    %v893 = vmul.f32 %v887, 0.70710677
    %v894 = verf.f32.pop %v892
    %v895 = verf.f32.pop %v893
    %v896 = vadd.f32 %v894, 1.0
    %v897 = vadd.f32 %v895, 1.0
    %v898 = vmul.f32 %v890, %v896
    %v899 = vmul.f32 %v891, %v897
    %v900 = vpack.c.bf16 %v899, %v898
    %v901 = vld [vmem:[%s4] sm:$0xf]
    %v902 = vld [vmem:[%s4 + $0x4] sm:$0xf]
    %v903 = vld [vmem:[%s4 + $0x8] sm:$0xf]
    %v904 = vld [vmem:[%s4 + $0xc] sm:$0xf]
    %v905 = vld [vmem:[%s4 + $0x10] sm:$0xf]
    %v906 = vld [vmem:[%s4 + $0x14] sm:$0xf]
    %v907 = vld [vmem:[%s4 + $0x18] sm:$0xf]
    %v908 = vld [vmem:[%s4 + $0x1c] sm:$0xf]
    %v909 = vlaneseq
    %v910 = vshrl.u32 %v909, 7
    %v911 = vsub.s32 0, %v910
    %v912 = vrot.slane %v58, %v911
    %v921 = vunpack.c.l.b16 %v901
    %v922 = vunpack.c.l.b16 %v902
    %v923 = vunpack.c.l.b16 %v903
    %v924 = vunpack.c.l.b16 %v904
    %v925 = vunpack.c.l.b16 %v905
    %v926 = vunpack.c.l.b16 %v906
    %v927 = vunpack.c.l.b16 %v907
    %v928 = vunpack.c.l.b16 %v908
    %v929 = vpack.c.b16 %v922, %v921
    %v930 = vpack.c.b16 %v924, %v923
    %v931 = vpack.c.b16 %v926, %v925
    %v932 = vpack.c.b16 %v928, %v927
    %vm937 = vcmask 523264
    %v939 = vsel %vm937, %v900, 0
    %941 = vmatprep.subr.bf16.mxu0 0
    %942 = vmatpush1.bf16.msra.mxu0 %v929
    %943 = vmatprep.subr.bf16.mxu0 0
    %944 = vmatpush1.bf16.msra.mxu0 %v930
    %945 = vmatprep.subr.bf16.mxu0 0
    %946 = vmatpush1.bf16.msra.mxu0 %v931
    %947 = vmatprep.subr.bf16.mxu0 0
    %948 = vmatpush1.bf16.msra.mxu0 %v932
    %949 = vmatprep.subr.bf16.mxu0 0
    %950 = vmatpush1.bf16.msra.mxu0 0
    %951 = vmatprep.subr.bf16.mxu0 0
    %952 = vmatpush1.bf16.msra.mxu0 0
    %953 = vmatprep.subr.bf16.mxu0 0
    %954 = vmatpush1.bf16.msra.mxu0 0
    %955 = vmatprep.subr.bf16.mxu0 0
    %956 = vmatpush1.bf16.msra.mxu0 0
    %957 = vmatprep.subr.bf16.mxu0 0
    %958 = vmatpush1.bf16.msra.mxu0 0
    %959 = vmatprep.subr.bf16.mxu0 0
    %960 = vmatpush1.bf16.msra.mxu0 0
    %961 = vmatprep.subr.bf16.mxu0 0
    %962 = vmatpush1.bf16.msra.mxu0 0
    %963 = vmatprep.subr.bf16.mxu0 0
    %964 = vmatpush1.bf16.msra.mxu0 0
    %965 = vmatprep.subr.bf16.mxu0 0
    %966 = vmatpush1.bf16.msra.mxu0 0
    %967 = vmatprep.subr.bf16.mxu0 0
    %968 = vmatpush1.bf16.msra.mxu0 0
    %969 = vmatprep.subr.bf16.mxu0 0
    %970 = vmatpush1.bf16.msra.mxu0 0
    %971 = vmatprep.subr.bf16.mxu0 0
    %972 = vmatpush1.bf16.msra.mxu0 0
    %973 = vmatprep.mubr.bf16.mxu0 0
    %974 = vmatmul.mubr.bf16.gmra.mrb[0].mxu0 %v939
    %v975 = vpop.f32.mrb[0].mxu0
    %v976 = vadd.f32 %v912, %v975
    %v977 = vpop.f32.mrb[0].mxu0
    %v978 = vpop.f32.mrb[0].mxu0
    %v979 = vadd.f32 %v912, %v978
    %v980 = vpop.f32.mrb[0].mxu0
    %981 = vdwg.mxu0
    %v982 = vadd.f32 %v820, %v976
    %v983 = vadd.f32 %v821, %v979
    %v984 = vsel %vm83, %v982, 0.0
    %985 = vadd.xlane.f32.xlu0 %v984
    %v986 = vpop.xlane.xlu0 %985
    %v987 = vsel %vm83, %v983, 0.0
    %988 = vadd.xlane.f32.xlu0 %v987
    %v989 = vpop.xlane.xlu0 %988
    %v990 = vmul.f32 %v986, %v789
    %v991 = vmul.f32 %v989, %v789
    %v992 = vsub.f32 %v982, %v990
    %v993 = vsub.f32 %v983, %v991
    %v994 = vmul.f32 %v992, %v992
    %v995 = vmul.f32 %v993, %v993
    %v996 = vsel %vm83, %v994, 0.0
    %997 = vadd.xlane.f32.xlu0 %v996
    %v998 = vpop.xlane.xlu0 %997
    %v999 = vsel %vm83, %v995, 0.0
    %1000 = vadd.xlane.f32.xlu0 %v999
    %v1001 = vpop.xlane.xlu0 %1000
    %v1002 = vmul.f32 %v998, %v789
    %v1003 = vmul.f32 %v1001, %v789
    %v1004 = vadd.f32 %v1002, 1e-05
    %v1005 = vadd.f32 %v1003, 1e-05
    %v1006 = vrsqrt.pop %v1004
    %v1007 = vrsqrt.pop %v1005
    %v1008 = vmul.f32 %v992, %v1006
    %v1009 = vmul.f32 %v993, %v1007
    %v1010 = vlaneseq
    %v1011 = vshrl.u32 %v1010, 7
    %v1012 = vsub.s32 0, %v1011
    %v1013 = vrot.slane %v56, %v1012
    %v1014 = vmul.f32 %v1008, %v1013
    %v1015 = vmul.f32 %v1009, %v1013
    %v1016 = vlaneseq
    %v1017 = vshrl.u32 %v1016, 7
    %v1018 = vsub.s32 0, %v1017
    %v1019 = vrot.slane %v57, %v1018
    %v1020 = vadd.f32 %v1014, %v1019
    %v1021 = vadd.f32 %v1015, %v1019
    %1022 = vst.msk [vmem:[#allocation5] sm:$0xff] %vm83, %v1020
    %1023 = vst.msk [vmem:[#allocation5 + $0x8] sm:$0xff] %vm83, %v1021
    %v1024 = vpack.c.bf16 %v1021, %v1020
    %v1025 = vld [vmem:[%s5] sm:$0xf]
    %v1026 = vld [vmem:[%s5 + $0x4] sm:$0xf]
    %v1027 = vld [vmem:[%s5 + $0x8] sm:$0xf]
    %v1028 = vld [vmem:[%s5 + $0xc] sm:$0xf]
    %v1033 = vunpack.c.l.b16 %v1025
    %v1034 = vunpack.c.l.b16 %v1026
    %v1035 = vunpack.c.l.b16 %v1027
    %v1036 = vunpack.c.l.b16 %v1028
    %v1037 = vpack.c.b16 %v1034, %v1033
    %v1038 = vpack.c.b16 %v1036, %v1035
    %v1042 = vsel %vm83, %v1024, 0
    %1044 = vmatprep.subr.bf16.mxu0 0
    %1045 = vmatpush1.bf16.msra.mxu0 %v1037
    %1046 = vmatprep.subr.bf16.mxu0 0
    %1047 = vmatpush1.bf16.msra.mxu0 %v1038
    %1048 = vmatprep.subr.bf16.mxu0 0
    %1049 = vmatpush1.bf16.msra.mxu0 0
    %1050 = vmatprep.subr.bf16.mxu0 0
    %1051 = vmatpush1.bf16.msra.mxu0 0
    %1052 = vmatprep.subr.bf16.mxu0 0
    %1053 = vmatpush1.bf16.msra.mxu0 0
    %1054 = vmatprep.subr.bf16.mxu0 0
    %1055 = vmatpush1.bf16.msra.mxu0 0
    %1056 = vmatprep.subr.bf16.mxu0 0
    %1057 = vmatpush1.bf16.msra.mxu0 0
    %1058 = vmatprep.subr.bf16.mxu0 0
    %1059 = vmatpush1.bf16.msra.mxu0 0
    %1060 = vmatprep.subr.bf16.mxu0 0
    %1061 = vmatpush1.bf16.msra.mxu0 0
    %1062 = vmatprep.subr.bf16.mxu0 0
    %1063 = vmatpush1.bf16.msra.mxu0 0
    %1064 = vmatprep.subr.bf16.mxu0 0
    %1065 = vmatpush1.bf16.msra.mxu0 0
    %1066 = vmatprep.subr.bf16.mxu0 0
    %1067 = vmatpush1.bf16.msra.mxu0 0
    %1068 = vmatprep.subr.bf16.mxu0 0
    %1069 = vmatpush1.bf16.msra.mxu0 0
    %1070 = vmatprep.subr.bf16.mxu0 0
    %1071 = vmatpush1.bf16.msra.mxu0 0
    %1072 = vmatprep.subr.bf16.mxu0 0
    %1073 = vmatpush1.bf16.msra.mxu0 0
    %1074 = vmatprep.subr.bf16.mxu0 0
    %1075 = vmatpush1.bf16.msra.mxu0 0
    %1076 = vmatprep.mubr.bf16.mxu0 0
    %1077 = vmatmul.mubr.bf16.gmra.mrb[0].mxu0 %v1042
    %v1078 = vpop.f32.mrb[0].mxu0
    %v1079 = vadd.f32 0.0, %v1078
    %v1080 = vpop.f32.mrb[0].mxu0
    %v1081 = vpop.f32.mrb[0].mxu0
    %v1082 = vadd.f32 0.0, %v1081
    %v1083 = vpop.f32.mrb[0].mxu0
    %1084 = vdwg.mxu0
    %1085 = vst.msk [vmem:[#allocation6] sm:$0xff] %vm937, %v1079
    %1086 = vst.msk [vmem:[#allocation6 + $0x8] sm:$0xff] %vm937, %v1082
    // Predicated region
    $region42: #{tpu_custom_call.1} parent=1 // pred_check
      _
    $region43: #{tpu_custom_call.1} parent=1 // pred_check_branch
      %1088 = sbr.rel (0) target = $region45
    $region44: #{tpu_custom_call.1} parent=1 // pred_region
      %s1090 = ssub.s32 256, 256
      %1091 = vsyncadd [#allocation4], %s1090
      %s1092 = sshll.u32 [#allocation5], 4
      %s1093 = int_to_ptr.vmem [resolvable:$true] %s1092
      %1098 = dma.vmem_to_hbm [thread:$0]  %s1093, 256, %s9, [#allocation4], 128, 128, 8
    $region45: #{tpu_custom_call.1} parent=1 // pred_fallthru
      _
    // Predicated region
    $region46: #{tpu_custom_call.1} parent=1 // pred_check
      _
    $region47: #{tpu_custom_call.1} parent=1 // pred_check_branch
      %1100 = sbr.rel (0) target = $region49
    $region48: #{tpu_custom_call.1} parent=1 // pred_region
      %s1102 = ssub.s32 256, 256
      %1103 = vsyncadd [#allocation7], %s1102
      %s1104 = sshll.u32 [#allocation6], 4
      %s1105 = int_to_ptr.vmem [resolvable:$true] %s1104
      %1110 = dma.vmem_to_hbm [thread:$0]  %s1105, 256, %s10, [#allocation7], 128, 128, 8
    $region49: #{tpu_custom_call.1} parent=1 // pred_fallthru
      _
    // Predicated region
    $region50: #{tpu_custom_call.1} parent=1 // pred_check
      _
    $region51: #{tpu_custom_call.1} parent=1 // pred_check_branch
      %1112 = sbr.rel (0) target = $region53
    $region52: #{tpu_custom_call.1} parent=1 // pred_region
      %1113 = dma.done [#allocation4], 256
    $region53: #{tpu_custom_call.1} parent=1 // pred_fallthru
      _
    // Predicated region
    $region54: #{tpu_custom_call.1} parent=1 // pred_check
      _
    $region55: #{tpu_custom_call.1} parent=1 // pred_check_branch
      %1115 = sbr.rel (0) target = $region57
    $region56: #{tpu_custom_call.1} parent=1 // pred_region
      %1116 = dma.done [#allocation7], 256
    $region57: #{tpu_custom_call.1} parent=1 // pred_fallthru
      _
    %1117 = vsyncpa [#allocation3], 1
    %1118 = vsyncpa [#allocation4], 1
    %1119 = vsyncpa [#allocation7], 1

</llo_original>
